<compile_context>
chip_gen: v6e
topology: v6e:2x2x1
jax: 0.10.0
libtpu: 0.0.40
codegen_flags: <defaults>
</compile_context>

<pallas_src>
import math
from functools import partial, lru_cache

import numpy as np
import jax
import jax.numpy as jnp
from jax.experimental import pallas as pl
from jax.experimental.pallas import tpu as pltpu


# --------------------------------------------------------------------------
# numpy glue: 2d sincos positional embedding (exact port of the reference)
# --------------------------------------------------------------------------
def get_1d_sincos_pos_embed_from_grid(embed_dim, pos):
    assert embed_dim % 2 == 0
    omega = np.arange(embed_dim // 2, dtype=np.float32)
    omega /= embed_dim / 2.0
    omega = 1.0 / 10000 ** omega
    pos = pos.reshape(-1)
    out = np.einsum('m,d->md', pos, omega)
    return np.concatenate([np.sin(out), np.cos(out)], axis=1)


def get_2d_sincos_pos_embed_from_grid(embed_dim, grid):
    assert embed_dim % 2 == 0
    emb_h = get_1d_sincos_pos_embed_from_grid(embed_dim // 2, grid[0])
    emb_w = get_1d_sincos_pos_embed_from_grid(embed_dim // 2, grid[1])
    return np.concatenate([emb_h, emb_w], axis=1)


def get_2d_sincos_pos_embed(embed_dim, grid_size):
    grid_h = np.arange(grid_size, dtype=np.float32)
    grid_w = np.arange(grid_size, dtype=np.float32)
    grid = np.meshgrid(grid_w, grid_h)
    grid = np.stack(grid, axis=0).reshape([2, 1, grid_size, grid_size])
    return get_2d_sincos_pos_embed_from_grid(embed_dim, grid)


# --------------------------------------------------------------------------
# numpy glue: bicubic interpolation (F.interpolate bicubic, align_corners=False,
# a = -0.75) as a separable (dst, src) resize matrix -> get_abs_pos
# --------------------------------------------------------------------------
def _cubic_kernel(d, a=-0.75):
    d = abs(float(d))
    if d <= 1.0:
        return (a + 2.0) * d ** 3 - (a + 3.0) * d ** 2 + 1.0
    if d < 2.0:
        return a * d ** 3 - 5.0 * a * d ** 2 + 8.0 * a * d - 4.0 * a
    return 0.0


def bicubic_resize_matrix(src, dst):
    M = np.zeros((dst, src), dtype=np.float64)
    scale = src / dst
    for i in range(dst):
        x = (i + 0.5) * scale - 0.5
        x0 = int(np.floor(x))
        t = x - x0
        w = [_cubic_kernel(1.0 + t), _cubic_kernel(t),
             _cubic_kernel(1.0 - t), _cubic_kernel(2.0 - t)]
        for k, off in enumerate((-1, 0, 1, 2)):
            idx = min(max(x0 + off, 0), src - 1)
            M[i, idx] += w[k]
    return M


@lru_cache(maxsize=None)
def _cached_resize_matrices(src, dst_h, dst_w):
    return bicubic_resize_matrix(src, dst_h), bicubic_resize_matrix(src, dst_w)


def get_abs_pos_np(pos_embed, tgt_hw):
    src = int(math.sqrt(pos_embed.shape[0]))
    D = pos_embed.shape[1]
    pe = pos_embed.reshape(src, src, D).astype(np.float64)
    Mh, Mw = _cached_resize_matrices(src, tgt_hw[0], tgt_hw[1])
    tmp = np.einsum('ip,pqd->iqd', Mh, pe)
    out = np.einsum('jq,iqd->ijd', Mw, tmp)
    return out.reshape(tgt_hw[0] * tgt_hw[1], D).astype(np.float32)


# --------------------------------------------------------------------------
# numpy glue: adapt_unfold (slice into regions + RoIAlign) as a pooling matrix
# --------------------------------------------------------------------------
def cal_best_pooling_size(feature_wh_ratio=1.0):
    candidate_pooling_sizes = [(4, 2), (3, 2), (4, 3), (3, 3), (2, 4), (2, 3), (3, 4)]
    log_r = math.log(feature_wh_ratio)
    best, min_err = (3, 3), float('inf')
    for (w, h) in candidate_pooling_sizes:
        err = abs(log_r - math.log(w / h))
        if err < min_err:
            best, min_err = (h, w), err
    return best


# TODO(synk): slice_image_feature_minicpm / RoIAlign are not provided with the
# reference module; approximated here by a row-major (gh, gw) grid of equal
# regions (gh*gw == num_queries, grid matched to aspect ratio) and a RoIAlign
# with sampling_ratio=1 folded into a dense bilinear sampling matrix
# S (num_queries * P, H * W) so the kernel does it as MXU matmuls.
def build_region_pool_matrix(H, W, num_queries):
    best, best_err = None, float('inf')
    for gh in range(1, num_queries + 1):
        if num_queries % gh:
            continue
        gw = num_queries // gh
        err = abs(math.log((W / gw) / (H / gh)))
        if err < best_err:
            best_err, best = err, (gh, gw)
    gh, gw = best
    wh_ratio = (W / gw) / (H / gh)
    out_h, out_w = cal_best_pooling_size(wh_ratio)
    P = out_h * out_w
    S = np.zeros((num_queries * P, H * W), dtype=np.float64)
    rh, rw = H / gh, W / gw
    for gy in range(gh):
        for gx in range(gw):
            q = gy * gw + gx
            bh, bw = rh / out_h, rw / out_w
            for oy in range(out_h):
                for ox in range(out_w):
                    p = oy * out_w + ox
                    sy = gy * rh + (oy + 0.5) * bh - 0.5
                    sx = gx * rw + (ox + 0.5) * bw - 0.5
                    y0, x0 = int(np.floor(sy)), int(np.floor(sx))
                    ty, tx = sy - y0, sx - x0
                    for dy, wy in ((0, 1.0 - ty), (1, ty)):
                        for dx, wx in ((0, 1.0 - tx), (1, tx)):
                            yy = min(max(y0 + dy, 0), H - 1)
                            xx = min(max(x0 + dx, 0), W - 1)
                            S[q * P + p, yy * W + xx] += wy * wx
    return S.astype(np.float32), P


@lru_cache(maxsize=None)
def _cached_region_pool(H, W, num_queries):
    return build_region_pool_matrix(H, W, num_queries)


# --------------------------------------------------------------------------
# generation-aware planning helpers
# --------------------------------------------------------------------------
def _vmem_budget_bytes():
    cap = 128 * 1024 * 1024
    try:
        cap = int(pltpu.get_tpu_info().vmem_capacity_bytes)
    except Exception:
        pass
    # <= ~40 MiB on v7x (64 MiB/TC), <= 80 MiB on 128 MiB-class chips (v5e/v6e)
    return min(cap * 5 // 8, 80 * 1024 * 1024)


def _divisor_tiles(L):
    cands = {L}
    for d in range(16, L + 1, 16):
        if L % d == 0:
            cands.add(d)
    return sorted(cands, reverse=True)


def _plan_streaming(L, kv_dim, QP, D, budget, tl=None):
    """Pick the token tile TL and whether S can stay VMEM-resident."""
    def est(tl_, resident):
        e = 2 * tl_ * kv_dim * 4                 # x tile (f32, double-buffered)
        e += QP * D * 4                          # f32 accumulator scratch
        e += 2 * QP * D * 2                      # pooled output block (bf16, x2)
        e += 2 * (kv_dim * D * 2 + 4 * D * 4)    # kv_proj weight + ln_kv vectors
        e += 3 * tl_ * D * 4                     # in-kernel kv intermediates (rough)
        e += (2 * QP * L * 2) if resident else (2 * QP * tl_ * 2)
        return e

    if tl is not None:
        assert L % tl == 0 and (tl == L or tl % 16 == 0), "bad tile override"
        tiles = [tl]
    else:
        tiles = _divisor_tiles(L)
    for resident in (True, False):               # prefer batch-invariant resident S
        for t in tiles:                          # prefer the largest tile that fits
            if est(t, resident) <= budget * 9 // 10:
                return t, L // t, resident
    t = tiles[-1]
    return t, L // t, False


def _pick_batch_block(bs, Q, QP, D, budget):
    """Largest divisor of bs whose epilogue working set fits (M = BB*Q rows)."""
    best = 1
    for bb in range(1, bs + 1):
        if bs % bb:
            continue
        e = 2 * bb * QP * D * 2 + 4 * bb * QP * 2 * D * 4 + 2 * bb * Q * 128 * 4
        if bb * Q <= 2048 and e <= budget // 2:
            best = bb
    return best


# --------------------------------------------------------------------------
# Pallas kernels
# --------------------------------------------------------------------------
def _layernorm(v, g, b, eps=1e-6):
    # eps=1e-6 matches norm_layer=partial(nn.LayerNorm, eps=1e-06) in the spec.
    mu = jnp.mean(v, axis=-1, keepdims=True)
    var = jnp.mean((v - mu) ** 2, axis=-1, keepdims=True)
    return (v - mu) * jax.lax.rsqrt(var + eps) * g + b


def _pool_stream_kernel(x_ref, s3_ref, kvw_ref, lnkv_g_ref, lnkv_b_ref,
                        pooled_ref, acc_ref, *, s_resident):
    l = pl.program_id(1)

    @pl.when(l == 0)
    def _init():
        acc_ref[...] = jnp.zeros_like(acc_ref)

    # kv_proj + ln_kv on this token tile.  x is cast to bf16 in-kernel so the
    # HBM stream stays at the caller's dtype (no wrapper-side recast pass).
    xb = x_ref[0].astype(jnp.bfloat16)
    kv = jnp.dot(xb, kvw_ref[...], preferred_element_type=jnp.float32)
    kv = _layernorm(kv, lnkv_g_ref[...], lnkv_b_ref[...])        # (TL, D) f32

    # RoIAlign-style pooling: accumulate S[:, tile] @ kv into f32 scratch.
    # TODO(synk): S is separable bilinear (<=4 nonzeros/row); a factored
    # row/column pooling would cut the streaming MXU work further.
    s_tile = s3_ref[l] if s_resident else s3_ref[0]              # (QP, TL) bf16
    acc_ref[...] += jnp.dot(s_tile, kv.astype(jnp.bfloat16),
                            preferred_element_type=jnp.float32)

    @pl.when(l == pl.num_programs(1) - 1)
    def _emit():
        pooled_ref[0] = acc_ref[...].astype(pooled_ref.dtype)


def _attn_epilogue_kernel(pooled_ref, wkv_ref, kvc_ref, qrep_ref, hselp_ref,
                          hseltp_ref, wo_ref, bo_ref, lnp_g_ref, lnp_b_ref,
                          projp_ref, out_ref, *, num_queries, pool_len,
                          embed_dim, heads_padded):
    Q, P, D, NHp = num_queries, pool_len, embed_dim, heads_padded
    BB = pooled_ref.shape[0]
    QP = Q * P

    pooled = pooled_ref[...].reshape(BB * QP, D)                 # bf16
    # fused k/v projection; kvc = [ (S@key_pos)@Wk^T + bk | bv ]
    kvp = jnp.dot(pooled, wkv_ref[...], preferred_element_type=jnp.float32)
    kvp = kvp.reshape(BB, QP, 2 * D) + kvc_ref[...][None].astype(jnp.float32)
    kp = kvp[..., :D]
    vp = kvp[..., D:]

    # per-head logits: elementwise q*k (f32) reduced per head via a 0/1
    # head-selection matmul padded to 128 lanes (lane-dense logits/softmax);
    # qrep already carries the 1/sqrt(head_dim) scale.
    prod = kp * qrep_ref[...][None].astype(jnp.float32)          # (BB, QP, D)
    logits = jnp.dot(prod.reshape(BB * QP, D), hselp_ref[...],
                     preferred_element_type=jnp.float32)         # (BB*QP, NHp)
    lg = logits.reshape(BB, Q, P, NHp)
    m = jnp.max(lg, axis=2, keepdims=True)
    e = jnp.exp(lg - m)
    w = e * pl.reciprocal(jnp.sum(e, axis=2, keepdims=True), approx=True)

    # broadcast head weights across their D lanes, weighted V sum over P
    wfull = jnp.dot(w.reshape(BB * QP, NHp).astype(jnp.bfloat16),
                    hseltp_ref[...], preferred_element_type=jnp.float32)
    attn = jnp.sum(wfull.reshape(BB, Q, P, D) * vp.reshape(BB, Q, P, D),
                   axis=2).reshape(BB * Q, D)

    o = jnp.dot(attn.astype(jnp.bfloat16), wo_ref[...],
                preferred_element_type=jnp.float32) + bo_ref[...]
    o = _layernorm(o, lnp_g_ref[...], lnp_b_ref[...])            # ln_post
    o = jnp.dot(o.astype(jnp.bfloat16), projp_ref[...],
                preferred_element_type=jnp.float32)              # (BB*Q, Dp)
    out_ref[...] = o.reshape(BB, Q, -1).astype(out_ref.dtype)


# --------------------------------------------------------------------------
# parameter init (deterministic, shapes match the torch __init__)
# --------------------------------------------------------------------------
def init_params(key, grid_size, embed_dim, num_heads, kv_dim):
    Q, D = grid_size ** 2, embed_dim
    ks = jax.random.split(key, 5)

    def tn(k, shape, std=0.02):
        return std * jax.random.truncated_normal(k, -2.0, 2.0, shape, dtype=jnp.float32)

    # NOTE: when kv_dim == embed_dim the reference uses nn.Identity for
    # kv_proj; set kv_w to the identity matrix in that case to match.
    return dict(
        pos_embed=jnp.asarray(get_2d_sincos_pos_embed(D, grid_size), jnp.float32),
        query=tn(ks[0], (Q, D)),
        kv_w=tn(ks[1], (D, kv_dim)),              # nn.Linear(kv_dim, D, bias=False).weight
        in_proj_w=tn(ks[2], (3 * D, D)),          # MHA in_proj_weight
        in_proj_b=jnp.zeros((3 * D,), jnp.float32),
        out_proj_w=tn(ks[3], (D, D)),
        out_proj_b=jnp.zeros((D,), jnp.float32),
        ln_q_g=jnp.ones((D,), jnp.float32), ln_q_b=jnp.zeros((D,), jnp.float32),
        ln_kv_g=jnp.ones((D,), jnp.float32), ln_kv_b=jnp.zeros((D,), jnp.float32),
        ln_post_g=jnp.ones((D,), jnp.float32), ln_post_b=jnp.zeros((D,), jnp.float32),
        proj=(D ** -0.5) * jax.random.normal(ks[4], (D, D), dtype=jnp.float32),
    )


# --------------------------------------------------------------------------
# one-time host preprocessing: builds device constants + the execution plan
# --------------------------------------------------------------------------
def prepare_resampler(params, grid_size, num_heads, tgt_size, tl=None):
    H, W = tgt_size
    L = H * W
    D = int(params['proj'].shape[0])
    kv_dim = int(params['kv_w'].shape[1])
    Q = grid_size ** 2
    DH = D // num_heads

    pos_embed = np.asarray(params['pos_embed'], np.float32)        # (Q, D)
    key_pos = get_abs_pos_np(pos_embed, (H, W))                    # (L, D)
    S, P = _cached_region_pool(H, W, Q)                            # (Q*P, L)
    QP = Q * P

    budget = _vmem_budget_bytes()
    TL, nL, s_resident = _plan_streaming(L, kv_dim, QP, D, budget, tl)

    # ln_q(query) + pos_embed, then the MHA q-projection (scaled) -- host side
    query = np.asarray(params['query'], np.float32)
    mu = query.mean(-1, keepdims=True)
    var = ((query - mu) ** 2).mean(-1, keepdims=True)
    q_ln = (query - mu) / np.sqrt(var + 1e-6) \
        * np.asarray(params['ln_q_g'], np.float32) \
        + np.asarray(params['ln_q_b'], np.float32)
    q_full = q_ln + pos_embed                                      # (Q, D)

    in_w = np.asarray(params['in_proj_w'], np.float32)
    in_b = np.asarray(params['in_proj_b'], np.float32)
    wq, wk, wv = in_w[:D], in_w[D:2 * D], in_w[2 * D:]
    bq, bk, bv = in_b[:D], in_b[D:2 * D], in_b[2 * D:]

    scale = 1.0 / math.sqrt(DH)
    q_proj = (q_full @ wq.T + bq) * scale                          # (Q, D)
    qrep = np.repeat(q_proj, P, axis=0)                            # (Q*P, D)

    pos_pool = S @ key_pos                                         # (Q*P, D)
    kv_const = np.concatenate(
        [pos_pool @ wk.T + bk[None, :],
         np.broadcast_to(bv[None, :], (QP, D))], axis=1)           # (Q*P, 2D)
    wkv = np.concatenate([wk.T, wv.T], axis=1)                     # (D, 2D)

    NHp = max(128, ((num_heads + 127) // 128) * 128)               # lane-dense logits
    hsel = np.zeros((D, NHp), np.float32)                          # 0/1 head map
    for h in range(num_heads):
        hsel[h * DH:(h + 1) * DH, h] = 1.0

    Dp = ((D + 127) // 128) * 128                                  # lane-dense out
    proj_pad = np.zeros((D, Dp), np.float32)
    proj_pad[:, :D] = np.asarray(params['proj'], np.float32)

    # S sliced per L-tile on a leading axis (works both resident and streamed)
    s3 = S.reshape(QP, nL, TL).transpose(1, 0, 2)                  # (nL, Q*P, TL)

    bf, f32 = jnp.bfloat16, jnp.float32
    consts = dict(
        s3=jnp.asarray(s3, bf),
        kvw=jnp.asarray(np.asarray(params['kv_w'], np.float32).T, bf),
        lnkv_g=jnp.asarray(np.asarray(params['ln_kv_g'], np.float32).reshape(1, D), f32),
        lnkv_b=jnp.asarray(np.asarray(params['ln_kv_b'], np.float32).reshape(1, D), f32),
        wkv=jnp.asarray(wkv, bf),
        kvc=jnp.asarray(kv_const, bf),          # bf16 (reference path is bf16)
        qrep=jnp.asarray(qrep, bf),             # bf16: halves resident size
        hselp=jnp.asarray(hsel, f32),           # f32: keep q.k head-sum in f32
        hseltp=jnp.asarray(hsel.T, bf),
        wo=jnp.asarray(np.asarray(params['out_proj_w'], np.float32).T, bf),
        bo=jnp.asarray(np.asarray(params['out_proj_b'], np.float32).reshape(1, D), f32),
        lnp_g=jnp.asarray(np.asarray(params['ln_post_g'], np.float32).reshape(1, D), f32),
        lnp_b=jnp.asarray(np.asarray(params['ln_post_b'], np.float32).reshape(1, D), f32),
        projp=jnp.asarray(proj_pad, bf),
    )
    meta = dict(Q=Q, P=P, D=D, Dp=Dp, NHp=NHp, H=H, W=W, L=L, TL=TL, nL=nL,
                s_resident=s_resident, vmem_limit=budget, num_heads=num_heads)
    return consts, meta


# --------------------------------------------------------------------------
# forward wrapper (two pallas_calls: streaming pooler + batched epilogue)
# --------------------------------------------------------------------------
def _const_spec(shape, grid_rank, single_buffer):
    nd = len(shape)
    if grid_rank == 1:
        index_map = lambda b: (0,) * nd
    else:
        index_map = lambda i, l: (0,) * nd
    if single_buffer:
        try:
            return pl.BlockSpec(shape, index_map, pipeline_mode=pl.Buffered(1))
        except Exception:
            pass
    return pl.BlockSpec(shape, index_map)


def _forward_impl(x, prepared, single_buffer):
    consts, meta = prepared
    Q, P, D, Dp, NHp = meta['Q'], meta['P'], meta['D'], meta['Dp'], meta['NHp']
    L, TL, nL = meta['L'], meta['TL'], meta['nL']
    s_resident = meta['s_resident']
    vmem_limit = meta['vmem_limit']
    QP = Q * P
    bs, Lx, kv_dim = x.shape
    assert Lx == L, "x sequence length must equal H*W of tgt_size"

    # ---- stage 1: streaming kv_proj + ln_kv + region pooling (grid bs x nL) --
    if s_resident:
        s3_spec = _const_spec((nL, QP, TL), 2, single_buffer)
    else:
        s3_spec = pl.BlockSpec((1, QP, TL), lambda i, l: (l, 0, 0))

    stream_in_specs = [
        pl.BlockSpec((1, TL, kv_dim), lambda i, l: (i, l, 0)),      # x, cast in-kernel
        s3_spec,
        _const_spec(tuple(consts['kvw'].shape), 2, single_buffer),
        _const_spec(tuple(consts['lnkv_g'].shape), 2, single_buffer),
        _const_spec(tuple(consts['lnkv_b'].shape), 2, single_buffer),
    ]

    pooled = pl.pallas_call(
        partial(_pool_stream_kernel, s_resident=s_resident),
        out_shape=jax.ShapeDtypeStruct((bs, QP, D), jnp.bfloat16),
        grid_spec=pltpu.PrefetchScalarGridSpec(
            num_scalar_prefetch=0,
            grid=(bs, nL),
            in_specs=stream_in_specs,
            out_specs=pl.BlockSpec((1, QP, D), lambda i, l: (i, 0, 0)),
            scratch_shapes=[pltpu.VMEM((QP, D), jnp.float32)],
        ),
        compiler_params=pltpu.CompilerParams(
            dimension_semantics=("parallel", "arbitrary"),
            vmem_limit_bytes=vmem_limit),
    )(x, consts['s3'], consts['kvw'], consts['lnkv_g'], consts['lnkv_b'])
    # TODO(synk): for bs==1 on v7x add a second parallel axis (QP chunks) so
    # both TensorCores are busy during the streaming phase.

    # ---- stage 2: batched attention / out_proj / ln_post / proj -------------
    BB = _pick_batch_block(bs, Q, QP, D, vmem_limit)
    nB = bs // BB
    carg_names = ('wkv', 'kvc', 'qrep', 'hselp', 'hseltp', 'wo', 'bo',
                  'lnp_g', 'lnp_b', 'projp')
    cargs = [consts[k] for k in carg_names]

    epi_in_specs = [pl.BlockSpec((BB, QP, D), lambda b: (b, 0, 0))]
    epi_in_specs += [_const_spec(tuple(a.shape), 1, single_buffer) for a in cargs]

    out = pl.pallas_call(
        partial(_attn_epilogue_kernel, num_queries=Q, pool_len=P,
                embed_dim=D, heads_padded=NHp),
        out_shape=jax.ShapeDtypeStruct((bs, Q, Dp), jnp.bfloat16),
        grid_spec=pltpu.PrefetchScalarGridSpec(
            num_scalar_prefetch=0,
            grid=(nB,),
            in_specs=epi_in_specs,
            out_specs=pl.BlockSpec((BB, Q, Dp), lambda b: (b, 0, 0)),
        ),
        compiler_params=pltpu.CompilerParams(
            dimension_semantics=("parallel",),
            vmem_limit_bytes=vmem_limit),
    )(pooled, *cargs)

    return out if Dp == D else out[..., :D]


_SINGLE_BUFFER_OK = None   # None: untested; True/False: pipeline_mode support


def adapt_spatial_resampler_forward(x, prepared):
    global _SINGLE_BUFFER_OK
    if _SINGLE_BUFFER_OK is None:
        try:
            out = jax.block_until_ready(_forward_impl(x, prepared, True))
            _SINGLE_BUFFER_OK = True
            return out
        except Exception:
            _SINGLE_BUFFER_OK = False   # Buffered(1) hint rejected; run without
    return _forward_impl(x, prepared, _SINGLE_BUFFER_OK)


# --------------------------------------------------------------------------
if __name__ == "__main__":
    bs, grid_size, embed_dim, num_heads, kv_dim = 2, 4, 32, 4, 16
    tgt_size = (8, 8)                                # key spatial size (H, W)

    root = jax.random.PRNGKey(0)
    pkey, xkey = jax.random.split(root)
    params = init_params(pkey, grid_size, embed_dim, num_heads, kv_dim)

    # one-time host prep (cached glue + device constants); tl=32 -> 2 L-tiles
    prepared = prepare_resampler(params, grid_size, num_heads, tgt_size, tl=32)

    # x: (batch, H*W, kv_dim) in f32; the bf16 cast happens inside the kernel
    x = jax.random.normal(xkey, (bs, tgt_size[0] * tgt_size[1], kv_dim),
                          dtype=jnp.float32)

    out = adapt_spatial_resampler_forward(x, prepared)
    out = jax.block_until_ready(out)
    assert out.shape == (bs, grid_size ** 2, embed_dim)
    assert out.dtype == jnp.bfloat16
    assert bool(jnp.all(jnp.isfinite(out.astype(jnp.float32))))
    print("KERNEL_OK")
</pallas_src>

<mosaic_0001>
module attributes {stable_mosaic.version = 11 : i64} {
  func.func @_pool_stream_kernel(%arg0: i32, %arg1: i32, %arg2: memref<1x32x16xf32, #tpu.memory_space<vmem>>, %arg3: memref<2x144x32xbf16, #tpu.memory_space<vmem>>, %arg4: memref<16x32xbf16, #tpu.memory_space<vmem>>, %arg5: memref<1x32xf32, #tpu.memory_space<vmem>>, %arg6: memref<1x32xf32, #tpu.memory_space<vmem>>, %arg7: memref<1x144x32xbf16, #tpu.memory_space<vmem>>, %arg8: memref<144x32xf32, #tpu.memory_space<vmem>>) attributes {dimension_semantics = [#tpu.dimension_semantics<parallel>, #tpu.dimension_semantics<arbitrary>], iteration_bounds = array<i64: 2, 2>, scalar_prefetch = 0 : i64, scratch_operands = 1 : i64, tpu.core_type = #tpu.core_type<tc>, window_params = [{transform_indices = @transform_0, window_bounds = array<i64: 1, 32, 16>}, {pipeline_mode = #tpu.pipeline_mode<synchronous>, transform_indices = @transform_1, window_bounds = array<i64: 2, 144, 32>}, {pipeline_mode = #tpu.pipeline_mode<synchronous>, transform_indices = @transform_2, window_bounds = array<i64: 16, 32>}, {pipeline_mode = #tpu.pipeline_mode<synchronous>, transform_indices = @transform_3, window_bounds = array<i64: 1, 32>}, {pipeline_mode = #tpu.pipeline_mode<synchronous>, transform_indices = @transform_4, window_bounds = array<i64: 1, 32>}, {transform_indices = @transform_5, window_bounds = array<i64: 1, 144, 32>}]} {
    %c0_i32 = arith.constant 0 : i32
    %0 = arith.cmpi eq, %arg1, %c0_i32 : i32
    %1 = arith.extui %0 : i1 to i32
    %c0_i32_0 = arith.constant 0 : i32
    %2 = arith.cmpi ne, %1, %c0_i32_0 : i32
    scf.if %2 {
      %cst_22 = arith.constant 0.000000e+00 : f32
      %43 = vector.broadcast %cst_22 : f32 to vector<144x32xf32>
      %c0_23 = arith.constant 0 : index
      %c0_24 = arith.constant 0 : index
      %44 = vector.load %arg8[%c0_23, %c0_24] : memref<144x32xf32, #tpu.memory_space<vmem>>, vector<144x32xf32>
      tpu.vector_store %arg8[%c0_23, %c0_24], %43 {strides = array<i32>} : memref<144x32xf32, #tpu.memory_space<vmem>>, vector<144x32xf32>,
    } else {
    }
    %c0 = arith.constant 0 : index
    %c0_1 = arith.constant 0 : index
    %c0_2 = arith.constant 0 : index
    %3 = vector.load %arg2[%c0, %c0_1, %c0_2] : memref<1x32x16xf32, #tpu.memory_space<vmem>>, vector<1x32x16xf32>
    %4 = vector.shape_cast %3 : vector<1x32x16xf32> to vector<32x16xf32>
    %5 = arith.truncf %4 : vector<32x16xf32> to vector<32x16xbf16>
    %c0_3 = arith.constant 0 : index
    %c0_4 = arith.constant 0 : index
    %6 = vector.load %arg4[%c0_3, %c0_4] : memref<16x32xbf16, #tpu.memory_space<vmem>>, vector<16x32xbf16>
    %cst = arith.constant dense<0.000000e+00> : vector<32x32xf32>
    %7 = tpu.matmul %5, %6, %cst {dimension_numbers = #tpu.dot_dimension_numbers<[1], [0], [0], [1], [0, 0, 1, 1], [], []>} : vector<32x16xbf16>, vector<16x32xbf16>, vector<32x32xf32> -> vector<32x32xf32>
    %c0_5 = arith.constant 0 : index
    %c0_6 = arith.constant 0 : index
    %8 = vector.load %arg5[%c0_5, %c0_6] : memref<1x32xf32, #tpu.memory_space<vmem>>, vector<1x32xf32>
    %c0_7 = arith.constant 0 : index
    %c0_8 = arith.constant 0 : index
    %9 = vector.load %arg6[%c0_7, %c0_8] : memref<1x32xf32, #tpu.memory_space<vmem>>, vector<1x32xf32>
    %cst_9 = arith.constant dense<0.000000e+00> : vector<32xf32>
    %10 = vector.multi_reduction <add>, %7, %cst_9 [1] : vector<32x32xf32> to vector<32xf32>
    %11 = vector.shape_cast %10 : vector<32xf32> to vector<32x1xf32>
    %cst_10 = arith.constant 3.200000e+01 : f32
    %12 = vector.broadcast %cst_10 : f32 to vector<32x1xf32>
    %13 = arith.divf %11, %12 : vector<32x1xf32>
    %14 = vector.broadcast %13 : vector<32x1xf32> to vector<32x32xf32>
    %15 = arith.subf %7, %14 : vector<32x32xf32>
    %16 = arith.mulf %15, %15 : vector<32x32xf32>
    %cst_11 = arith.constant dense<0.000000e+00> : vector<32xf32>
    %17 = vector.multi_reduction <add>, %16, %cst_11 [1] : vector<32x32xf32> to vector<32xf32>
    %18 = vector.shape_cast %17 : vector<32xf32> to vector<32x1xf32>
    %cst_12 = arith.constant 3.200000e+01 : f32
    %19 = vector.broadcast %cst_12 : f32 to vector<32x1xf32>
    %20 = arith.divf %18, %19 : vector<32x1xf32>
    %21 = vector.broadcast %13 : vector<32x1xf32> to vector<32x32xf32>
    %22 = arith.subf %7, %21 : vector<32x32xf32>
    %cst_13 = arith.constant 9.99999997E-7 : f32
    %23 = vector.broadcast %cst_13 : f32 to vector<32x1xf32>
    %24 = arith.addf %20, %23 : vector<32x1xf32>
    %25 = math.rsqrt %24 : vector<32x1xf32>
    %26 = vector.broadcast %25 : vector<32x1xf32> to vector<32x32xf32>
    %27 = arith.mulf %22, %26 : vector<32x32xf32>
    %28 = vector.broadcast %8 : vector<1x32xf32> to vector<32x32xf32>
    %29 = arith.mulf %27, %28 : vector<32x32xf32>
    %30 = vector.broadcast %9 : vector<1x32xf32> to vector<32x32xf32>
    %31 = arith.addf %29, %30 : vector<32x32xf32>
    %32 = arith.index_cast %arg1 : i32 to index
    %c0_14 = arith.constant 0 : index
    %c0_15 = arith.constant 0 : index
    %33 = vector.load %arg3[%32, %c0_14, %c0_15] : memref<2x144x32xbf16, #tpu.memory_space<vmem>>, vector<1x144x32xbf16>
    %34 = vector.shape_cast %33 : vector<1x144x32xbf16> to vector<144x32xbf16>
    %c0_16 = arith.constant 0 : index
    %c0_17 = arith.constant 0 : index
    %35 = vector.load %arg8[%c0_16, %c0_17] : memref<144x32xf32, #tpu.memory_space<vmem>>, vector<144x32xf32>
    %36 = arith.truncf %31 : vector<32x32xf32> to vector<32x32xbf16>
    %cst_18 = arith.constant dense<0.000000e+00> : vector<144x32xf32>
    %37 = tpu.matmul %34, %36, %cst_18 {dimension_numbers = #tpu.dot_dimension_numbers<[1], [0], [0], [1], [0, 0, 1, 1], [], []>} : vector<144x32xbf16>, vector<32x32xbf16>, vector<144x32xf32> -> vector<144x32xf32>
    %38 = arith.addf %35, %37 : vector<144x32xf32>
    %c0_19 = arith.constant 0 : index
    %c0_20 = arith.constant 0 : index
    %39 = vector.load %arg8[%c0_19, %c0_20] : memref<144x32xf32, #tpu.memory_space<vmem>>, vector<144x32xf32>
    tpu.vector_store %arg8[%c0_19, %c0_20], %38 {strides = array<i32>} : memref<144x32xf32, #tpu.memory_space<vmem>>, vector<144x32xf32>,
    %c1_i32 = arith.constant 1 : i32
    %40 = arith.cmpi eq, %arg1, %c1_i32 : i32
    %41 = arith.extui %40 : i1 to i32
    %c0_i32_21 = arith.constant 0 : i32
    %42 = arith.cmpi ne, %41, %c0_i32_21 : i32
    scf.if %42 {
      %c0_22 = arith.constant 0 : index
      %c0_23 = arith.constant 0 : index
      %43 = vector.load %arg8[%c0_22, %c0_23] : memref<144x32xf32, #tpu.memory_space<vmem>>, vector<144x32xf32>
      %44 = arith.truncf %43 : vector<144x32xf32> to vector<144x32xbf16>
      %c0_24 = arith.constant 0 : index
      %c0_25 = arith.constant 0 : index
      %c0_26 = arith.constant 0 : index
      %45 = vector.load %arg7[%c0_24, %c0_25, %c0_26] : memref<1x144x32xbf16, #tpu.memory_space<vmem>>, vector<1x144x32xbf16>
      %46 = vector.shape_cast %45 : vector<1x144x32xbf16> to vector<144x32xbf16>
      %47 = vector.shape_cast %44 : vector<144x32xbf16> to vector<1x144x32xbf16>
      tpu.vector_store %arg7[%c0_24, %c0_25, %c0_26], %47 {strides = array<i32>} : memref<1x144x32xbf16, #tpu.memory_space<vmem>>, vector<1x144x32xbf16>,
    } else {
    }
    return
  }
  func.func @transform_0(%arg0: i32, %arg1: i32) -> (i32, i32, i32) {
    %c0_i32 = arith.constant 0 : i32
    %c0_i32_0 = arith.constant 0 : i32
    return %arg0, %arg1, %c0_i32 : i32, i32, i32
  }
  func.func @transform_1(%arg0: i32, %arg1: i32) -> (i32, i32, i32) {
    %c0_i32 = arith.constant 0 : i32
    %c0_i32_0 = arith.constant 0 : i32
    %c0_i32_1 = arith.constant 0 : i32
    %c0_i32_2 = arith.constant 0 : i32
    return %c0_i32, %c0_i32_0, %c0_i32_1 : i32, i32, i32
  }
  func.func @transform_2(%arg0: i32, %arg1: i32) -> (i32, i32) {
    %c0_i32 = arith.constant 0 : i32
    %c0_i32_0 = arith.constant 0 : i32
    %c0_i32_1 = arith.constant 0 : i32
    return %c0_i32, %c0_i32_0 : i32, i32
  }
  func.func @transform_3(%arg0: i32, %arg1: i32) -> (i32, i32) {
    %c0_i32 = arith.constant 0 : i32
    %c0_i32_0 = arith.constant 0 : i32
    %c0_i32_1 = arith.constant 0 : i32
    return %c0_i32, %c0_i32_0 : i32, i32
  }
  func.func @transform_4(%arg0: i32, %arg1: i32) -> (i32, i32) {
    %c0_i32 = arith.constant 0 : i32
    %c0_i32_0 = arith.constant 0 : i32
    %c0_i32_1 = arith.constant 0 : i32
    return %c0_i32, %c0_i32_0 : i32, i32
  }
  func.func @transform_5(%arg0: i32, %arg1: i32) -> (i32, i32, i32) {
    %c0_i32 = arith.constant 0 : i32
    %c0_i32_0 = arith.constant 0 : i32
    %c0_i32_1 = arith.constant 0 : i32
    return %arg0, %c0_i32, %c0_i32_0 : i32, i32, i32
  }
}

module attributes {stable_mosaic.version = 11 : i64} {
  func.func @_pool_stream_kernel(%arg0: i32, %arg1: i32, %arg2: memref<1x32x16xf32, #tpu.memory_space<vmem>>, %arg3: memref<2x144x32xbf16, #tpu.memory_space<vmem>>, %arg4: memref<16x32xbf16, #tpu.memory_space<vmem>>, %arg5: memref<1x32xf32, #tpu.memory_space<vmem>>, %arg6: memref<1x32xf32, #tpu.memory_space<vmem>>, %arg7: memref<1x144x32xbf16, #tpu.memory_space<vmem>>, %arg8: memref<144x32xf32, #tpu.memory_space<vmem>>) attributes {dimension_semantics = [#tpu.dimension_semantics<parallel>, #tpu.dimension_semantics<arbitrary>], iteration_bounds = array<i64: 2, 2>, scalar_prefetch = 0 : i64, scratch_operands = 1 : i64, tpu.core_type = #tpu.core_type<tc>, window_params = [{transform_indices = @transform_0, window_bounds = array<i64: 1, 32, 16>}, {pipeline_mode = #tpu.pipeline_mode<synchronous>, transform_indices = @transform_1, window_bounds = array<i64: 2, 144, 32>}, {pipeline_mode = #tpu.pipeline_mode<synchronous>, transform_indices = @transform_2, window_bounds = array<i64: 16, 32>}, {pipeline_mode = #tpu.pipeline_mode<synchronous>, transform_indices = @transform_3, window_bounds = array<i64: 1, 32>}, {pipeline_mode = #tpu.pipeline_mode<synchronous>, transform_indices = @transform_4, window_bounds = array<i64: 1, 32>}, {transform_indices = @transform_5, window_bounds = array<i64: 1, 144, 32>}]} {
    %c0_i32 = arith.constant 0 : i32
    %0 = arith.cmpi eq, %arg1, %c0_i32 : i32
    %1 = arith.extui %0 : i1 to i32
    %c0_i32_0 = arith.constant 0 : i32
    %2 = arith.cmpi ne, %1, %c0_i32_0 : i32
    scf.if %2 {
      %cst_22 = arith.constant 0.000000e+00 : f32
      %43 = vector.broadcast %cst_22 : f32 to vector<144x32xf32>
      %c0_23 = arith.constant 0 : index
      %c0_24 = arith.constant 0 : index
      %44 = vector.load %arg8[%c0_23, %c0_24] : memref<144x32xf32, #tpu.memory_space<vmem>>, vector<144x32xf32>
      tpu.vector_store %arg8[%c0_23, %c0_24], %43 {strides = array<i32>} : memref<144x32xf32, #tpu.memory_space<vmem>>, vector<144x32xf32>,
    } else {
    }
    %c0 = arith.constant 0 : index
    %c0_1 = arith.constant 0 : index
    %c0_2 = arith.constant 0 : index
    %3 = vector.load %arg2[%c0, %c0_1, %c0_2] : memref<1x32x16xf32, #tpu.memory_space<vmem>>, vector<1x32x16xf32>
    %4 = vector.shape_cast %3 : vector<1x32x16xf32> to vector<32x16xf32>
    %5 = arith.truncf %4 : vector<32x16xf32> to vector<32x16xbf16>
    %c0_3 = arith.constant 0 : index
    %c0_4 = arith.constant 0 : index
    %6 = vector.load %arg4[%c0_3, %c0_4] : memref<16x32xbf16, #tpu.memory_space<vmem>>, vector<16x32xbf16>
    %cst = arith.constant dense<0.000000e+00> : vector<32x32xf32>
    %7 = tpu.matmul %5, %6, %cst {dimension_numbers = #tpu.dot_dimension_numbers<[1], [0], [0], [1], [0, 0, 1, 1], [], []>} : vector<32x16xbf16>, vector<16x32xbf16>, vector<32x32xf32> -> vector<32x32xf32>
    %c0_5 = arith.constant 0 : index
    %c0_6 = arith.constant 0 : index
    %8 = vector.load %arg5[%c0_5, %c0_6] : memref<1x32xf32, #tpu.memory_space<vmem>>, vector<1x32xf32>
    %c0_7 = arith.constant 0 : index
    %c0_8 = arith.constant 0 : index
    %9 = vector.load %arg6[%c0_7, %c0_8] : memref<1x32xf32, #tpu.memory_space<vmem>>, vector<1x32xf32>
    %cst_9 = arith.constant dense<0.000000e+00> : vector<32xf32>
    %10 = vector.multi_reduction <add>, %7, %cst_9 [1] : vector<32x32xf32> to vector<32xf32>
    %11 = vector.shape_cast %10 : vector<32xf32> to vector<32x1xf32>
    %cst_10 = arith.constant 3.200000e+01 : f32
    %12 = vector.broadcast %cst_10 : f32 to vector<32x1xf32>
    %13 = arith.divf %11, %12 : vector<32x1xf32>
    %14 = vector.broadcast %13 : vector<32x1xf32> to vector<32x32xf32>
    %15 = arith.subf %7, %14 : vector<32x32xf32>
    %16 = arith.mulf %15, %15 : vector<32x32xf32>
    %cst_11 = arith.constant dense<0.000000e+00> : vector<32xf32>
    %17 = vector.multi_reduction <add>, %16, %cst_11 [1] : vector<32x32xf32> to vector<32xf32>
    %18 = vector.shape_cast %17 : vector<32xf32> to vector<32x1xf32>
    %cst_12 = arith.constant 3.200000e+01 : f32
    %19 = vector.broadcast %cst_12 : f32 to vector<32x1xf32>
    %20 = arith.divf %18, %19 : vector<32x1xf32>
    %21 = vector.broadcast %13 : vector<32x1xf32> to vector<32x32xf32>
    %22 = arith.subf %7, %21 : vector<32x32xf32>
    %cst_13 = arith.constant 9.99999997E-7 : f32
    %23 = vector.broadcast %cst_13 : f32 to vector<32x1xf32>
    %24 = arith.addf %20, %23 : vector<32x1xf32>
    %25 = math.rsqrt %24 : vector<32x1xf32>
    %26 = vector.broadcast %25 : vector<32x1xf32> to vector<32x32xf32>
    %27 = arith.mulf %22, %26 : vector<32x32xf32>
    %28 = vector.broadcast %8 : vector<1x32xf32> to vector<32x32xf32>
    %29 = arith.mulf %27, %28 : vector<32x32xf32>
    %30 = vector.broadcast %9 : vector<1x32xf32> to vector<32x32xf32>
    %31 = arith.addf %29, %30 : vector<32x32xf32>
    %32 = arith.index_cast %arg1 : i32 to index
    %c0_14 = arith.constant 0 : index
    %c0_15 = arith.constant 0 : index
    %33 = vector.load %arg3[%32, %c0_14, %c0_15] : memref<2x144x32xbf16, #tpu.memory_space<vmem>>, vector<1x144x32xbf16>
    %34 = vector.shape_cast %33 : vector<1x144x32xbf16> to vector<144x32xbf16>
    %c0_16 = arith.constant 0 : index
    %c0_17 = arith.constant 0 : index
    %35 = vector.load %arg8[%c0_16, %c0_17] : memref<144x32xf32, #tpu.memory_space<vmem>>, vector<144x32xf32>
    %36 = arith.truncf %31 : vector<32x32xf32> to vector<32x32xbf16>
    %cst_18 = arith.constant dense<0.000000e+00> : vector<144x32xf32>
    %37 = tpu.matmul %34, %36, %cst_18 {dimension_numbers = #tpu.dot_dimension_numbers<[1], [0], [0], [1], [0, 0, 1, 1], [], []>} : vector<144x32xbf16>, vector<32x32xbf16>, vector<144x32xf32> -> vector<144x32xf32>
    %38 = arith.addf %35, %37 : vector<144x32xf32>
    %c0_19 = arith.constant 0 : index
    %c0_20 = arith.constant 0 : index
    %39 = vector.load %arg8[%c0_19, %c0_20] : memref<144x32xf32, #tpu.memory_space<vmem>>, vector<144x32xf32>
    tpu.vector_store %arg8[%c0_19, %c0_20], %38 {strides = array<i32>} : memref<144x32xf32, #tpu.memory_space<vmem>>, vector<144x32xf32>,
    %c1_i32 = arith.constant 1 : i32
    %40 = arith.cmpi eq, %arg1, %c1_i32 : i32
    %41 = arith.extui %40 : i1 to i32
    %c0_i32_21 = arith.constant 0 : i32
    %42 = arith.cmpi ne, %41, %c0_i32_21 : i32
    scf.if %42 {
      %c0_22 = arith.constant 0 : index
      %c0_23 = arith.constant 0 : index
      %43 = vector.load %arg8[%c0_22, %c0_23] : memref<144x32xf32, #tpu.memory_space<vmem>>, vector<144x32xf32>
      %44 = arith.truncf %43 : vector<144x32xf32> to vector<144x32xbf16>
      %c0_24 = arith.constant 0 : index
      %c0_25 = arith.constant 0 : index
      %c0_26 = arith.constant 0 : index
      %45 = vector.load %arg7[%c0_24, %c0_25, %c0_26] : memref<1x144x32xbf16, #tpu.memory_space<vmem>>, vector<1x144x32xbf16>
      %46 = vector.shape_cast %45 : vector<1x144x32xbf16> to vector<144x32xbf16>
      %47 = vector.shape_cast %44 : vector<144x32xbf16> to vector<1x144x32xbf16>
      tpu.vector_store %arg7[%c0_24, %c0_25, %c0_26], %47 {strides = array<i32>} : memref<1x144x32xbf16, #tpu.memory_space<vmem>>, vector<1x144x32xbf16>,
    } else {
    }
    return
  }
  func.func @transform_0(%arg0: i32, %arg1: i32) -> (i32, i32, i32) {
    %c0_i32 = arith.constant 0 : i32
    %c0_i32_0 = arith.constant 0 : i32
    return %arg0, %arg1, %c0_i32 : i32, i32, i32
  }
  func.func @transform_1(%arg0: i32, %arg1: i32) -> (i32, i32, i32) {
    %c0_i32 = arith.constant 0 : i32
    %c0_i32_0 = arith.constant 0 : i32
    %c0_i32_1 = arith.constant 0 : i32
    %c0_i32_2 = arith.constant 0 : i32
    return %c0_i32, %c0_i32_0, %c0_i32_1 : i32, i32, i32
  }
  func.func @transform_2(%arg0: i32, %arg1: i32) -> (i32, i32) {
    %c0_i32 = arith.constant 0 : i32
    %c0_i32_0 = arith.constant 0 : i32
    %c0_i32_1 = arith.constant 0 : i32
    return %c0_i32, %c0_i32_0 : i32, i32
  }
  func.func @transform_3(%arg0: i32, %arg1: i32) -> (i32, i32) {
    %c0_i32 = arith.constant 0 : i32
    %c0_i32_0 = arith.constant 0 : i32
    %c0_i32_1 = arith.constant 0 : i32
    return %c0_i32, %c0_i32_0 : i32, i32
  }
  func.func @transform_4(%arg0: i32, %arg1: i32) -> (i32, i32) {
    %c0_i32 = arith.constant 0 : i32
    %c0_i32_0 = arith.constant 0 : i32
    %c0_i32_1 = arith.constant 0 : i32
    return %c0_i32, %c0_i32_0 : i32, i32
  }
  func.func @transform_5(%arg0: i32, %arg1: i32) -> (i32, i32, i32) {
    %c0_i32 = arith.constant 0 : i32
    %c0_i32_0 = arith.constant 0 : i32
    %c0_i32_1 = arith.constant 0 : i32
    return %arg0, %c0_i32, %c0_i32_0 : i32, i32, i32
  }
}

</mosaic_0001>

<llo_original>
// kernel: tpu_custom_call.1
$region0: #{tpu_custom_call.1}
  #allocation0 [shape = 'u32[]', space=smem, size = 0x4, offset = 0x4, fixed_abs, tag = 'smem constant byte address 0x4 - core index']
  #allocation1 [shape = 'u32[144,128]{1,0:T(1,128)}', space=vmem, size = 0x12000, scoped, tag = 'internal scratch']
  #allocation2 [shape = 'f32[144,32]{1,0:T(8,128)}', space=vmem, size = 0x12000, scoped, tag = 'scratch operand']
  %s0 = inlined_call_operand.vmem [shape: f32[2,64,16], index: 0, kind: input, shape index: {}]
  %s1 = inlined_call_operand.vmem [shape: bf16[2,144,32], index: 1, kind: input, shape index: {}]
  %s2 = inlined_call_operand.vmem [shape: bf16[16,32], index: 2, kind: input, shape index: {}]
  %s3 = inlined_call_operand.vmem [shape: f32[1,32], index: 3, kind: input, shape index: {}]
  %s4 = inlined_call_operand.vmem [shape: f32[1,32], index: 4, kind: input, shape index: {}]
  %s5 = inlined_call_operand.vmem [shape: bf16[2,144,32], index: 5, kind: output, shape index: {}]
  %s6 = sld [smem:[#allocation0]]
  $region61: #{tpu_custom_call.1} parent=0
    _
  %s8 = ssub.s32 1, %s6
  %s9 = scalar_select 0, %s8, %s6
  loop: start=0, step=1, limit=6
  $region2: #{tpu_custom_call.1} parent=0 // loop_pre_header
    _
  $region3: #{tpu_custom_call.1} parent=0 // loop_header
    %s11 = sphi 0, %s15
    %p12 = scmp.ge.s32.totalorder %s11, 6
    %s18 = sphi 0, %s30
    %s19 = sphi 0, %s26
    %s20 = sphi 0, %s18
    %s21 = sphi 0, %s19
    %s22 = sphi 0, %s20
    %s23 = sphi 0, %s21
    %s35 = sphi 0, %s37
    %s38 = sphi 0, %s35
    %s39 = sphi 0, %s38
    %s55 = sphi 0, %s39
    %s59 = sphi 0, %s59
    %s61 = sphi 0, %s59
    %s62 = sphi 0, %s61
    %s76 = sphi 0, %s62
    %s80 = sphi 0, %s80
    %s82 = sphi 0, %s80
    %s83 = sphi 0, %s82
    %s97 = sphi 0, %s83
    %s101 = sphi 0, %s101
    %s103 = sphi 0, %s101
    %s104 = sphi 0, %s103
    %s118 = sphi 0, %s104
    %s122 = sphi 0, %s122
    %s124 = sphi 0, %s122
    %s125 = sphi 0, %s124
    %s139 = sphi 0, %s125
    %s145 = sphi 0, %s147
    %s148 = sphi 0, %s145
    %s149 = sphi 0, %s148
    %s165 = sphi 0, %s149
  $region4: #{tpu_custom_call.1} parent=0 // loop_header_branch
    %14 = sbr.rel (%p12) target = $region8
  $region5: #{tpu_custom_call.1} parent=0 // loop_body
    %s16 = ssub.s32 %s11, 1
    %s17 = ssub.s32 %s11, 2
    %s24 = sadd.s32 1, %s19
    %p25 = scmp.ge.s32.totalorder %s24, 2
    %s26 = scalar_select %p25, 0, %s24
    %s27 = sadd.s32 1, %s18
    %s28 = scalar_select %p25, %s27, %s18
    %p29 = scmp.ge.s32.totalorder %s28, 2
    %s30 = scalar_select %p29, 0, %s28
    %s31 = ssub.s32 %s18, %s30
    %s32 = ssub.s32 %s19, %s26
    %s33 = sor.u32 %s31, %s32
    %p34 = scmp.eq.s32.totalorder %s33, 0
    %s36 = sadd.s32 %s35, 1
    %s37 = scalar_select %p34, %s35, %s36
    %p40 = pneg %p34
    %p41 = scmp.eq.s32.totalorder %s11, 3
    %p42 = por %p40, %p41
    %p43 = scmp.ne.s32.totalorder %s35, %s38
    %p44 = scmp.eq.s32.totalorder %s11, 0
    %p45 = por %p43, %p44
    %p46 = scmp.ne.s32.totalorder %s35, %s38
    %p47 = scmp.eq.s32.totalorder %s16, 3
    %p48 = por %p46, %p47
    %p49 = scmp.ne.s32.totalorder %s38, %s39
    %p50 = scmp.eq.s32.totalorder %s16, 0
    %p51 = por %p49, %p50
    %p52 = scmp.ne.s32.totalorder %s38, %s39
    %p53 = scmp.eq.s32.totalorder %s17, 3
    %p54 = por %p52, %p53
    %p56 = scmp.ne.s32.totalorder %s39, %s55
    %p57 = scmp.eq.s32.totalorder %s17, 0
    %p58 = por %p56, %p57
    %s60 = sadd.s32 %s59, 1
    %p63 = scmp.eq.s32.totalorder %s11, 3
    %p64 = scmp.ne.s32.totalorder %s59, %s61
    %p65 = scmp.eq.s32.totalorder %s11, 0
    %p66 = por %p64, %p65
    %p67 = scmp.ne.s32.totalorder %s59, %s61
    %p68 = scmp.eq.s32.totalorder %s16, 3
    %p69 = por %p67, %p68
    %p70 = scmp.ne.s32.totalorder %s61, %s62
    %p71 = scmp.eq.s32.totalorder %s16, 0
    %p72 = por %p70, %p71
    %p73 = scmp.ne.s32.totalorder %s61, %s62
    %p74 = scmp.eq.s32.totalorder %s17, 3
    %p75 = por %p73, %p74
    %p77 = scmp.ne.s32.totalorder %s62, %s76
    %p78 = scmp.eq.s32.totalorder %s17, 0
    %p79 = por %p77, %p78
    %s81 = sadd.s32 %s80, 1
    %p84 = scmp.eq.s32.totalorder %s11, 3
    %p85 = scmp.ne.s32.totalorder %s80, %s82
    %p86 = scmp.eq.s32.totalorder %s11, 0
    %p87 = por %p85, %p86
    %p88 = scmp.ne.s32.totalorder %s80, %s82
    %p89 = scmp.eq.s32.totalorder %s16, 3
    %p90 = por %p88, %p89
    %p91 = scmp.ne.s32.totalorder %s82, %s83
    %p92 = scmp.eq.s32.totalorder %s16, 0
    %p93 = por %p91, %p92
    %p94 = scmp.ne.s32.totalorder %s82, %s83
    %p95 = scmp.eq.s32.totalorder %s17, 3
    %p96 = por %p94, %p95
    %p98 = scmp.ne.s32.totalorder %s83, %s97
    %p99 = scmp.eq.s32.totalorder %s17, 0
    %p100 = por %p98, %p99
    %s102 = sadd.s32 %s101, 1
    %p105 = scmp.eq.s32.totalorder %s11, 3
    %p106 = scmp.ne.s32.totalorder %s101, %s103
    %p107 = scmp.eq.s32.totalorder %s11, 0
    %p108 = por %p106, %p107
    %p109 = scmp.ne.s32.totalorder %s101, %s103
    %p110 = scmp.eq.s32.totalorder %s16, 3
    %p111 = por %p109, %p110
    %p112 = scmp.ne.s32.totalorder %s103, %s104
    %p113 = scmp.eq.s32.totalorder %s16, 0
    %p114 = por %p112, %p113
    %p115 = scmp.ne.s32.totalorder %s103, %s104
    %p116 = scmp.eq.s32.totalorder %s17, 3
    %p117 = por %p115, %p116
    %p119 = scmp.ne.s32.totalorder %s104, %s118
    %p120 = scmp.eq.s32.totalorder %s17, 0
    %p121 = por %p119, %p120
    %s123 = sadd.s32 %s122, 1
    %p126 = scmp.eq.s32.totalorder %s11, 3
    %p127 = scmp.ne.s32.totalorder %s122, %s124
    %p128 = scmp.eq.s32.totalorder %s11, 0
    %p129 = por %p127, %p128
    %p130 = scmp.ne.s32.totalorder %s122, %s124
    %p131 = scmp.eq.s32.totalorder %s16, 3
    %p132 = por %p130, %p131
    %p133 = scmp.ne.s32.totalorder %s124, %s125
    %p134 = scmp.eq.s32.totalorder %s16, 0
    %p135 = por %p133, %p134
    %p136 = scmp.ne.s32.totalorder %s124, %s125
    %p137 = scmp.eq.s32.totalorder %s17, 3
    %p138 = por %p136, %p137
    %p140 = scmp.ne.s32.totalorder %s125, %s139
    %p141 = scmp.eq.s32.totalorder %s17, 0
    %p142 = por %p140, %p141
    %s143 = ssub.s32 %s18, %s30
    %p144 = scmp.eq.s32.totalorder %s143, 0
    %s146 = sadd.s32 %s145, 1
    %s147 = scalar_select %p144, %s145, %s146
    %p150 = pneg %p144
    %p151 = scmp.eq.s32.totalorder %s11, 3
    %p152 = por %p150, %p151
    %p153 = scmp.ne.s32.totalorder %s145, %s148
    %p154 = scmp.eq.s32.totalorder %s11, 0
    %p155 = por %p153, %p154
    %p156 = scmp.ne.s32.totalorder %s145, %s148
    %p157 = scmp.eq.s32.totalorder %s16, 3
    %p158 = por %p156, %p157
    %p159 = scmp.ne.s32.totalorder %s148, %s149
    %p160 = scmp.eq.s32.totalorder %s16, 0
    %p161 = por %p159, %p160
    %p162 = scmp.ne.s32.totalorder %s148, %s149
    %p163 = scmp.eq.s32.totalorder %s17, 3
    %p164 = por %p162, %p163
    %p166 = scmp.ne.s32.totalorder %s149, %s165
    %p167 = scmp.eq.s32.totalorder %s17, 0
    %p168 = por %p166, %p167
    %p169 = scmp.le.s32.totalorder 1, %s11
    %p170 = scmp.lt.s32.totalorder %s11, 5
    %p171 = pnand %p169, %p170
    %p172 = pneg %p171
    // Predicated region
    $region9: #{tpu_custom_call.1} parent=5 // pred_check
      _
    $region10: #{tpu_custom_call.1} parent=5 // pred_check_branch
      %174 = sbr.rel (%p171) target = $region12
    $region11: #{tpu_custom_call.1} parent=5 // pred_region
      %s175 = ssub.s32 %s11, 1
      // Predicated region
      $region13: #{tpu_custom_call.1} parent=11 // pred_check
        %p176 = pneg %p72
      $region14: #{tpu_custom_call.1} parent=11 // pred_check_branch
        %178 = sbr.rel (%p176) target = $region16
      $region15: #{tpu_custom_call.1} parent=11 // pred_region
        _
      $region16: #{tpu_custom_call.1} parent=11 // pred_fallthru
        _
      // Predicated region
      $region17: #{tpu_custom_call.1} parent=11 // pred_check
        %p179 = pneg %p93
      $region18: #{tpu_custom_call.1} parent=11 // pred_check_branch
        %181 = sbr.rel (%p179) target = $region20
      $region19: #{tpu_custom_call.1} parent=11 // pred_region
        _
      $region20: #{tpu_custom_call.1} parent=11 // pred_fallthru
        _
      // Predicated region
      $region21: #{tpu_custom_call.1} parent=11 // pred_check
        %p182 = pneg %p114
      $region22: #{tpu_custom_call.1} parent=11 // pred_check_branch
        %184 = sbr.rel (%p182) target = $region24
      $region23: #{tpu_custom_call.1} parent=11 // pred_region
        _
      $region24: #{tpu_custom_call.1} parent=11 // pred_fallthru
        _
      // Predicated region
      $region25: #{tpu_custom_call.1} parent=11 // pred_check
        %p185 = pneg %p135
      $region26: #{tpu_custom_call.1} parent=11 // pred_check_branch
        %187 = sbr.rel (%p185) target = $region28
      $region27: #{tpu_custom_call.1} parent=11 // pred_region
        _
      $region28: #{tpu_custom_call.1} parent=11 // pred_fallthru
        _
    $region12: #{tpu_custom_call.1} parent=5 // pred_fallthru
      _
    %p188 = scmp.lt.s32.totalorder %s11, 4
    // Predicated region
    $region29: #{tpu_custom_call.1} parent=5 // pred_check
      %p189 = pneg %p188
    $region30: #{tpu_custom_call.1} parent=5 // pred_check_branch
      %191 = sbr.rel (%p189) target = $region32
    $region31: #{tpu_custom_call.1} parent=5 // pred_region
      // Predicated region
      $region33: #{tpu_custom_call.1} parent=31 // pred_check
        %p192 = pneg %p45
      $region34: #{tpu_custom_call.1} parent=31 // pred_check_branch
        %194 = sbr.rel (%p192) target = $region36
      $region35: #{tpu_custom_call.1} parent=31 // pred_region
        %s195 = smul.u32 4, %s19
        %p196 = scmp.lt.s32.totalorder %s18, 1
        %s197 = scalar_select %p196, %s18, 1
        %p198 = scmp.lt.s32.totalorder %s195, 7
        %s199 = scalar_select %p198, %s195, 7
        %s200 = smul.addr %s197, 8
        %s201 = sadd.s32 %s199, %s200
        %s202 = smul.addr %s201, 8
        %s203 = scalar_lea.vmem %s0, %s202
        %s204 = smul.u32 4, %s19
      $region36: #{tpu_custom_call.1} parent=31 // pred_fallthru
        _
    $region32: #{tpu_custom_call.1} parent=5 // pred_fallthru
      _
    %p205 = scmp.le.s32.totalorder 1, %s11
    %p206 = scmp.lt.s32.totalorder %s11, 5
    %p207 = pnand %p205, %p206
    %p208 = pneg %p207
    // Predicated region
    $region37: #{tpu_custom_call.1} parent=5 // pred_check
      _
    $region38: #{tpu_custom_call.1} parent=5 // pred_check_branch
      %210 = sbr.rel (%p207) target = $region40
    $region39: #{tpu_custom_call.1} parent=5 // pred_region
      %s211 = ssub.s32 %s11, 1
      %s212 = smul.u32 4, %s21
      %p213 = scmp.lt.s32.totalorder %s20, 1
      %s214 = scalar_select %p213, %s20, 1
      %p215 = scmp.lt.s32.totalorder %s212, 7
      %s216 = scalar_select %p215, %s212, 7
      %s217 = smul.addr %s214, 8
      %s218 = sadd.s32 %s216, %s217
      %s219 = smul.addr %s218, 8
      %s220 = scalar_lea.vmem %s0, %s219
      %p221 = pneg %p51
      %p222 = pneg %p48
      %p223 = pneg %p72
      %p224 = pneg %p69
      %p225 = pneg %p93
      %p226 = pneg %p90
      %p227 = pneg %p114
      %p228 = pneg %p111
      %p229 = pneg %p135
      %p230 = pneg %p132
      %p231 = pneg %p161
      %p232 = pneg %p158
      %p233 = scmp.lt.s32.totalorder %s20, 1
      %s234 = scalar_select %p233, %s20, 1
      %s235 = smul.addr %s234, 18
      %s236 = smul.addr %s235, 4
      %s237 = scalar_lea.vmem %s5, %s236
      %s238 = smul.u32 4, %s21
      %p239 = scmp.lt.s32.totalorder %s20, 1
      %s240 = scalar_select %p239, %s20, 1
      %p241 = scmp.lt.s32.totalorder %s238, 7
      %s242 = scalar_select %p241, %s238, 7
      %s243 = smul.addr %s240, 8
      %s244 = sadd.s32 %s242, %s243
      %s245 = smul.addr %s244, 8
      %s246 = scalar_lea.vmem %s0, %s245
      %s247 = smul.u32 4, %s21
      %p248 = scmp.lt.s32.totalorder %s20, 1
      %s249 = scalar_select %p248, %s20, 1
      %s250 = smul.addr %s249, 18
      %s251 = smul.addr %s250, 4
      %s252 = scalar_lea.vmem %s5, %s251
      %p254 = scmp.eq.s32.totalorder %s21, 0
      // Predicated region
      $region41: #{tpu_custom_call.1} parent=39 // pred_check
        %p255 = pneg %p254
      $region42: #{tpu_custom_call.1} parent=39 // pred_check_branch
        %257 = sbr.rel (%p255) target = $region44
      $region43: #{tpu_custom_call.1} parent=39 // pred_region
        %vm258 = vcmask 261120
        %259 = vst.msk [vmem:[#allocation2] sm:$0xff] %vm258, 0.0
        %260 = vst.msk [vmem:[#allocation2 + $0x8] sm:$0xff] %vm258, 0.0
        %261 = vst.msk [vmem:[#allocation2 + $0x10] sm:$0xff] %vm258, 0.0
        %262 = vst.msk [vmem:[#allocation2 + $0x18] sm:$0xff] %vm258, 0.0
        %263 = vst.msk [vmem:[#allocation2 + $0x20] sm:$0xff] %vm258, 0.0
        %264 = vst.msk [vmem:[#allocation2 + $0x28] sm:$0xff] %vm258, 0.0
        %265 = vst.msk [vmem:[#allocation2 + $0x30] sm:$0xff] %vm258, 0.0
        %266 = vst.msk [vmem:[#allocation2 + $0x38] sm:$0xff] %vm258, 0.0
        %267 = vst.msk [vmem:[#allocation2 + $0x40] sm:$0xff] %vm258, 0.0
        %268 = vst.msk [vmem:[#allocation2 + $0x48] sm:$0xff] %vm258, 0.0
        %269 = vst.msk [vmem:[#allocation2 + $0x50] sm:$0xff] %vm258, 0.0
        %270 = vst.msk [vmem:[#allocation2 + $0x58] sm:$0xff] %vm258, 0.0
        %271 = vst.msk [vmem:[#allocation2 + $0x60] sm:$0xff] %vm258, 0.0
        %272 = vst.msk [vmem:[#allocation2 + $0x68] sm:$0xff] %vm258, 0.0
        %273 = vst.msk [vmem:[#allocation2 + $0x70] sm:$0xff] %vm258, 0.0
        %274 = vst.msk [vmem:[#allocation2 + $0x78] sm:$0xff] %vm258, 0.0
        %275 = vst.msk [vmem:[#allocation2 + $0x80] sm:$0xff] %vm258, 0.0
        %276 = vst.msk [vmem:[#allocation2 + $0x88] sm:$0xff] %vm258, 0.0
      $region44: #{tpu_custom_call.1} parent=39 // pred_fallthru
        _
      %v277 = vld [vmem:[%s246] sm:$0xff]
      %v278 = vld [vmem:[%s246 + $0x8] sm:$0xff]
      %v279 = vld [vmem:[%s246 + $0x10] sm:$0xff]
      %v280 = vld [vmem:[%s246 + $0x18] sm:$0xff]
      %v281 = vpack.c.bf16 %v278, %v277
      %v282 = vpack.c.bf16 %v280, %v279
      %v283 = vld [vmem:[%s2] sm:$0xf]
      %v284 = vld [vmem:[%s2 + $0x4] sm:$0xf]
      %v287 = vunpack.c.l.b16 %v283
      %v288 = vunpack.c.l.b16 %v284
      %v289 = vpack.c.b16 %v288, %v287
      %vm291 = vcmask 130048
      %v293 = vsel %vm291, %v281, 0
      %v296 = vsel %vm291, %v282, 0
      %298 = vmatprep.subr.bf16.mxu0 0
      %299 = vmatpush1.bf16.msra.mxu0 0
      %300 = vmatprep.subr.bf16.mxu0 0
      %301 = vmatpush1.bf16.msra.mxu0 0
      %302 = vmatprep.subr.bf16.mxu0 0
      %303 = vmatpush1.bf16.msra.mxu0 0
      %304 = vmatprep.subr.bf16.mxu0 0
      %305 = vmatpush1.bf16.msra.mxu0 0
      %306 = vmatprep.subr.bf16.mxu0 0
      %307 = vmatpush1.bf16.msra.mxu0 0
      %308 = vmatprep.subr.bf16.mxu0 0
      %309 = vmatpush1.bf16.msra.mxu0 0
      %310 = vmatprep.subr.bf16.mxu0 0
      %311 = vmatpush1.bf16.msra.mxu0 0
      %312 = vmatprep.subr.bf16.mxu0 0
      %313 = vmatpush1.bf16.msra.mxu0 %v289
      %314 = vmatprep.subr.bf16.mxu0 0
      %315 = vmatpush2.bf16.msra.mxu0 0
      %316 = vmatprep.subr.bf16.mxu0 0
      %317 = vmatpush2.bf16.msra.mxu0 0
      %318 = vmatprep.subr.bf16.mxu0 0
      %319 = vmatpush2.bf16.msra.mxu0 0
      %320 = vmatprep.subr.bf16.mxu0 0
      %321 = vmatpush2.bf16.msra.mxu0 0
      %322 = vmatprep.subr.bf16.mxu0 0
      %323 = vmatpush2.bf16.msra.mxu0 0
      %324 = vmatprep.subr.bf16.mxu0 0
      %325 = vmatpush2.bf16.msra.mxu0 0
      %326 = vmatprep.subr.bf16.mxu0 0
      %327 = vmatpush2.bf16.msra.mxu0 0
      %328 = vmatprep.subr.bf16.mxu0 0
      %329 = vmatpush2.bf16.msra.mxu0 0
      %330 = vmatprep.mubr.bf16.mxu0 0
      %331 = vmatmul.mubr.bf16.gmra.mxu0 %v293
      %v332 = vpop.f32.mrf.mxu0
      %v333 = vadd.f32 0.0, %v332
      %v334 = vpop.f32.mrf.mxu0
      %v335 = vpop.f32.mrf.mxu0
      %v336 = vadd.f32 0.0, %v335
      %v337 = vpop.f32.mrf.mxu0
      %338 = vmatprep.mubr.bf16.mxu0 0
      %339 = vmatmul.mubr.bf16.gmra.mxu0 %v296
      %v340 = vpop.f32.mrf.mxu0
      %v341 = vadd.f32 0.0, %v340
      %v342 = vpop.f32.mrf.mxu0
      %v343 = vpop.f32.mrf.mxu0
      %v344 = vadd.f32 0.0, %v343
      %v345 = vpop.f32.mrf.mxu0
      %346 = vdwg.mxu0
      %v347 = vld [vmem:[%s3] sm:$0x1]
      %v348 = vld [vmem:[%s4] sm:$0x1]
      %vm349 = vcmask 261120
      %v350 = vsel %vm349, %v333, 0.0
      %351 = vadd.xlane.f32.xlu0 %v350
      %v352 = vpop.xlane.xlu0 %351
      %v353 = vsel %vm349, %v336, 0.0
      %354 = vadd.xlane.f32.xlu0 %v353
      %v355 = vpop.xlane.xlu0 %354
      %v356 = vsel %vm349, %v341, 0.0
      %357 = vadd.xlane.f32.xlu0 %v356
      %v358 = vpop.xlane.xlu0 %357
      %v359 = vsel %vm349, %v344, 0.0
      %360 = vadd.xlane.f32.xlu0 %v359
      %v361 = vpop.xlane.xlu0 %360
      %v362 = vrcp.pop 32.0
      %v363 = vmul.f32 %v352, %v362
      %v364 = vmul.f32 %v355, %v362
      %v365 = vmul.f32 %v358, %v362
      %v366 = vmul.f32 %v361, %v362
      %v367 = vsub.f32 %v333, %v363
      %v368 = vsub.f32 %v336, %v364
      %v369 = vsub.f32 %v341, %v365
      %v370 = vsub.f32 %v344, %v366
      %v371 = vmul.f32 %v367, %v367
      %v372 = vmul.f32 %v368, %v368
      %v373 = vmul.f32 %v369, %v369
      %v374 = vmul.f32 %v370, %v370
      %v375 = vsel %vm349, %v371, 0.0
      %376 = vadd.xlane.f32.xlu0 %v375
      %v377 = vpop.xlane.xlu0 %376
      %v378 = vsel %vm349, %v372, 0.0
      %379 = vadd.xlane.f32.xlu0 %v378
      %v380 = vpop.xlane.xlu0 %379
      %v381 = vsel %vm349, %v373, 0.0
      %382 = vadd.xlane.f32.xlu0 %v381
      %v383 = vpop.xlane.xlu0 %382
      %v384 = vsel %vm349, %v374, 0.0
      %385 = vadd.xlane.f32.xlu0 %v384
      %v386 = vpop.xlane.xlu0 %385
      %v387 = vmul.f32 %v377, %v362
      %v388 = vmul.f32 %v380, %v362
      %v389 = vmul.f32 %v383, %v362
      %v390 = vmul.f32 %v386, %v362
      %v391 = vadd.f32 %v387, 1e-06
      %v392 = vadd.f32 %v388, 1e-06
      %v393 = vadd.f32 %v389, 1e-06
      %v394 = vadd.f32 %v390, 1e-06
      %v395 = vrsqrt.pop %v391
      %v396 = vrsqrt.pop %v392
      %v397 = vrsqrt.pop %v393
      %v398 = vrsqrt.pop %v394
      %v399 = vmul.f32 %v367, %v395
      %v400 = vmul.f32 %v368, %v396
      %v401 = vmul.f32 %v369, %v397
      %v402 = vmul.f32 %v370, %v398
      %v404 = vlaneseq
      %v405 = vshrl.u32 %v404, 7
      %v406 = vsub.s32 0, %v405
      %v407 = vrot.slane %v347, %v406
      %v409 = vmul.f32 %v399, %v407
      %v410 = vmul.f32 %v400, %v407
      %v411 = vmul.f32 %v401, %v407
      %v412 = vmul.f32 %v402, %v407
      %v414 = vlaneseq
      %v415 = vshrl.u32 %v414, 7
      %v416 = vsub.s32 0, %v415
      %v417 = vrot.slane %v348, %v416
      %v419 = vadd.f32 %v409, %v417
      %v420 = vadd.f32 %v410, %v417
      %v421 = vadd.f32 %v411, %v417
      %v422 = vadd.f32 %v412, %v417
      %s423 = smul.u32 %s21, 18
      %s424 = smul.addr %s423, 4
      %s425 = scalar_lea.vmem %s1, %s424
      %v426 = vld [vmem:[%s425] sm:$0xf]
      %v427 = vld [vmem:[%s425 + $0x4] sm:$0xf]
      %v428 = vld [vmem:[%s425 + $0x8] sm:$0xf]
      %v429 = vld [vmem:[%s425 + $0xc] sm:$0xf]
      %v430 = vld [vmem:[%s425 + $0x10] sm:$0xf]
      %v431 = vld [vmem:[%s425 + $0x14] sm:$0xf]
      %v432 = vld [vmem:[%s425 + $0x18] sm:$0xf]
      %v433 = vld [vmem:[%s425 + $0x1c] sm:$0xf]
      %v434 = vld [vmem:[%s425 + $0x20] sm:$0xf]
      %v435 = vld [vmem:[%s425 + $0x24] sm:$0xf]
      %v436 = vld [vmem:[%s425 + $0x28] sm:$0xf]
      %v437 = vld [vmem:[%s425 + $0x2c] sm:$0xf]
      %v438 = vld [vmem:[%s425 + $0x30] sm:$0xf]
      %v439 = vld [vmem:[%s425 + $0x34] sm:$0xf]
      %v440 = vld [vmem:[%s425 + $0x38] sm:$0xf]
      %v441 = vld [vmem:[%s425 + $0x3c] sm:$0xf]
      %v442 = vld [vmem:[%s425 + $0x40] sm:$0xf]
      %v443 = vld [vmem:[%s425 + $0x44] sm:$0xf]
      %v444 = vld [vmem:[#allocation2] sm:$0xff]
      %v445 = vld [vmem:[#allocation2 + $0x8] sm:$0xff]
      %v446 = vld [vmem:[#allocation2 + $0x10] sm:$0xff]
      %v447 = vld [vmem:[#allocation2 + $0x18] sm:$0xff]
      %v448 = vld [vmem:[#allocation2 + $0x20] sm:$0xff]
      %v449 = vld [vmem:[#allocation2 + $0x28] sm:$0xff]
      %v450 = vld [vmem:[#allocation2 + $0x30] sm:$0xff]
      %v451 = vld [vmem:[#allocation2 + $0x38] sm:$0xff]
      %v452 = vld [vmem:[#allocation2 + $0x40] sm:$0xff]
      %v453 = vld [vmem:[#allocation2 + $0x48] sm:$0xff]
      %v454 = vld [vmem:[#allocation2 + $0x50] sm:$0xff]
      %v455 = vld [vmem:[#allocation2 + $0x58] sm:$0xff]
      %v456 = vld [vmem:[#allocation2 + $0x60] sm:$0xff]
      %v457 = vld [vmem:[#allocation2 + $0x68] sm:$0xff]
      %v458 = vld [vmem:[#allocation2 + $0x70] sm:$0xff]
      %v459 = vld [vmem:[#allocation2 + $0x78] sm:$0xff]
      %v460 = vld [vmem:[#allocation2 + $0x80] sm:$0xff]
      %v461 = vld [vmem:[#allocation2 + $0x88] sm:$0xff]
      %v462 = vpack.c.bf16 %v420, %v419
      %v463 = vpack.c.bf16 %v422, %v421
      %v482 = vunpack.c.l.b16 %v426
      %v483 = vunpack.c.l.b16 %v427
      %v484 = vunpack.c.l.b16 %v428
      %v485 = vunpack.c.l.b16 %v429
      %v486 = vunpack.c.l.b16 %v430
      %v487 = vunpack.c.l.b16 %v431
      %v488 = vunpack.c.l.b16 %v432
      %v489 = vunpack.c.l.b16 %v433
      %v490 = vunpack.c.l.b16 %v434
      %v491 = vunpack.c.l.b16 %v435
      %v492 = vunpack.c.l.b16 %v436
      %v493 = vunpack.c.l.b16 %v437
      %v494 = vunpack.c.l.b16 %v438
      %v495 = vunpack.c.l.b16 %v439
      %v496 = vunpack.c.l.b16 %v440
      %v497 = vunpack.c.l.b16 %v441
      %v498 = vunpack.c.l.b16 %v442
      %v499 = vunpack.c.l.b16 %v443
      %v500 = vpack.c.b16 %v483, %v482
      %v501 = vpack.c.b16 %v485, %v484
      %v502 = vpack.c.b16 %v487, %v486
      %v503 = vpack.c.b16 %v489, %v488
      %v504 = vpack.c.b16 %v491, %v490
      %v505 = vpack.c.b16 %v493, %v492
      %v506 = vpack.c.b16 %v495, %v494
      %v507 = vpack.c.b16 %v497, %v496
      %v508 = vpack.c.b16 %v499, %v498
      %v510 = vsel %vm349, %v500, 0
      %v513 = vsel %vm349, %v501, 0
      %v516 = vsel %vm349, %v502, 0
      %v519 = vsel %vm349, %v503, 0
      %v522 = vsel %vm349, %v504, 0
      %v525 = vsel %vm349, %v505, 0
      %v528 = vsel %vm349, %v506, 0
      %v531 = vsel %vm349, %v507, 0
      %v534 = vsel %vm349, %v508, 0
      %536 = vmatprep.subr.bf16.mxu0 0
      %537 = vmatpush1.bf16.msra.mxu0 0
      %538 = vmatprep.subr.bf16.mxu0 0
      %539 = vmatpush1.bf16.msra.mxu0 0
      %540 = vmatprep.subr.bf16.mxu0 0
      %541 = vmatpush1.bf16.msra.mxu0 0
      %542 = vmatprep.subr.bf16.mxu0 0
      %543 = vmatpush1.bf16.msra.mxu0 0
      %544 = vmatprep.subr.bf16.mxu0 0
      %545 = vmatpush1.bf16.msra.mxu0 0
      %546 = vmatprep.subr.bf16.mxu0 0
      %547 = vmatpush1.bf16.msra.mxu0 0
      %548 = vmatprep.subr.bf16.mxu0 0
      %549 = vmatpush1.bf16.msra.mxu0 %v463
      %550 = vmatprep.subr.bf16.mxu0 0
      %551 = vmatpush1.bf16.msra.mxu0 %v462
      %552 = vmatprep.subr.bf16.mxu0 0
      %553 = vmatpush2.bf16.msra.mxu0 0
      %554 = vmatprep.subr.bf16.mxu0 0
      %555 = vmatpush2.bf16.msra.mxu0 0
      %556 = vmatprep.subr.bf16.mxu0 0
      %557 = vmatpush2.bf16.msra.mxu0 0
      %558 = vmatprep.subr.bf16.mxu0 0
      %559 = vmatpush2.bf16.msra.mxu0 0
      %560 = vmatprep.subr.bf16.mxu0 0
      %561 = vmatpush2.bf16.msra.mxu0 0
      %562 = vmatprep.subr.bf16.mxu0 0
      %563 = vmatpush2.bf16.msra.mxu0 0
      %564 = vmatprep.subr.bf16.mxu0 0
      %565 = vmatpush2.bf16.msra.mxu0 0
      %566 = vmatprep.subr.bf16.mxu0 0
      %567 = vmatpush2.bf16.msra.mxu0 0
      %568 = vmatprep.mubr.bf16.mxu0 0
      %569 = vmatmul.mubr.bf16.gmra.mxu0 %v510
      %v570 = vpop.f32.mrf.mxu0
      %v571 = vadd.f32 0.0, %v570
      %v572 = vpop.f32.mrf.mxu0
      %v573 = vpop.f32.mrf.mxu0
      %v574 = vadd.f32 0.0, %v573
      %v575 = vpop.f32.mrf.mxu0
      %576 = vmatprep.mubr.bf16.mxu0 0
      %577 = vmatmul.mubr.bf16.gmra.mxu0 %v513
      %v578 = vpop.f32.mrf.mxu0
      %v579 = vadd.f32 0.0, %v578
      %v580 = vpop.f32.mrf.mxu0
      %v581 = vpop.f32.mrf.mxu0
      %v582 = vadd.f32 0.0, %v581
      %v583 = vpop.f32.mrf.mxu0
      %584 = vmatprep.mubr.bf16.mxu0 0
      %585 = vmatmul.mubr.bf16.gmra.mxu0 %v516
      %v586 = vpop.f32.mrf.mxu0
      %v587 = vadd.f32 0.0, %v586
      %v588 = vpop.f32.mrf.mxu0
      %v589 = vpop.f32.mrf.mxu0
      %v590 = vadd.f32 0.0, %v589
      %v591 = vpop.f32.mrf.mxu0
      %592 = vmatprep.mubr.bf16.mxu0 0
      %593 = vmatmul.mubr.bf16.gmra.mxu0 %v519
      %v594 = vpop.f32.mrf.mxu0
      %v595 = vadd.f32 0.0, %v594
      %v596 = vpop.f32.mrf.mxu0
      %v597 = vpop.f32.mrf.mxu0
      %v598 = vadd.f32 0.0, %v597
      %v599 = vpop.f32.mrf.mxu0
      %600 = vmatprep.mubr.bf16.mxu0 0
      %601 = vmatmul.mubr.bf16.gmra.mxu0 %v522
      %v602 = vpop.f32.mrf.mxu0
      %v603 = vadd.f32 0.0, %v602
      %v604 = vpop.f32.mrf.mxu0
      %v605 = vpop.f32.mrf.mxu0
      %v606 = vadd.f32 0.0, %v605
      %v607 = vpop.f32.mrf.mxu0
      %608 = vmatprep.mubr.bf16.mxu0 0
      %609 = vmatmul.mubr.bf16.gmra.mxu0 %v525
      %v610 = vpop.f32.mrf.mxu0
      %v611 = vadd.f32 0.0, %v610
      %v612 = vpop.f32.mrf.mxu0
      %v613 = vpop.f32.mrf.mxu0
      %v614 = vadd.f32 0.0, %v613
      %v615 = vpop.f32.mrf.mxu0
      %616 = vmatprep.mubr.bf16.mxu0 0
      %617 = vmatmul.mubr.bf16.gmra.mxu0 %v528
      %v618 = vpop.f32.mrf.mxu0
      %v619 = vadd.f32 0.0, %v618
      %v620 = vpop.f32.mrf.mxu0
      %v621 = vpop.f32.mrf.mxu0
      %v622 = vadd.f32 0.0, %v621
      %v623 = vpop.f32.mrf.mxu0
      %624 = vmatprep.mubr.bf16.mxu0 0
      %625 = vmatmul.mubr.bf16.gmra.mxu0 %v531
      %v626 = vpop.f32.mrf.mxu0
      %v627 = vadd.f32 0.0, %v626
      %v628 = vpop.f32.mrf.mxu0
      %v629 = vpop.f32.mrf.mxu0
      %v630 = vadd.f32 0.0, %v629
      %v631 = vpop.f32.mrf.mxu0
      %632 = vmatprep.mubr.bf16.mxu0 0
      %633 = vmatmul.mubr.bf16.gmra.mxu0 %v534
      %v634 = vpop.f32.mrf.mxu0
      %v635 = vadd.f32 0.0, %v634
      %v636 = vpop.f32.mrf.mxu0
      %v637 = vpop.f32.mrf.mxu0
      %v638 = vadd.f32 0.0, %v637
      %v639 = vpop.f32.mrf.mxu0
      %640 = vdwg.mxu0
      %v641 = vadd.f32 %v444, %v571
      %v642 = vadd.f32 %v445, %v574
      %v643 = vadd.f32 %v446, %v579
      %v644 = vadd.f32 %v447, %v582
      %v645 = vadd.f32 %v448, %v587
      %v646 = vadd.f32 %v449, %v590
      %v647 = vadd.f32 %v450, %v595
      %v648 = vadd.f32 %v451, %v598
      %v649 = vadd.f32 %v452, %v603
      %v650 = vadd.f32 %v453, %v606
      %v651 = vadd.f32 %v454, %v611
      %v652 = vadd.f32 %v455, %v614
      %v653 = vadd.f32 %v456, %v619
      %v654 = vadd.f32 %v457, %v622
      %v655 = vadd.f32 %v458, %v627
      %v656 = vadd.f32 %v459, %v630
      %v657 = vadd.f32 %v460, %v635
      %v658 = vadd.f32 %v461, %v638
      %659 = vst.msk [vmem:[#allocation2] sm:$0xff] %vm349, %v641
      %660 = vst.msk [vmem:[#allocation2 + $0x8] sm:$0xff] %vm349, %v642
      %661 = vst.msk [vmem:[#allocation2 + $0x10] sm:$0xff] %vm349, %v643
      %662 = vst.msk [vmem:[#allocation2 + $0x18] sm:$0xff] %vm349, %v644
      %663 = vst.msk [vmem:[#allocation2 + $0x20] sm:$0xff] %vm349, %v645
      %664 = vst.msk [vmem:[#allocation2 + $0x28] sm:$0xff] %vm349, %v646
      %665 = vst.msk [vmem:[#allocation2 + $0x30] sm:$0xff] %vm349, %v647
      %666 = vst.msk [vmem:[#allocation2 + $0x38] sm:$0xff] %vm349, %v648
      %667 = vst.msk [vmem:[#allocation2 + $0x40] sm:$0xff] %vm349, %v649
      %668 = vst.msk [vmem:[#allocation2 + $0x48] sm:$0xff] %vm349, %v650
      %669 = vst.msk [vmem:[#allocation2 + $0x50] sm:$0xff] %vm349, %v651
      %670 = vst.msk [vmem:[#allocation2 + $0x58] sm:$0xff] %vm349, %v652
      %671 = vst.msk [vmem:[#allocation2 + $0x60] sm:$0xff] %vm349, %v653
      %672 = vst.msk [vmem:[#allocation2 + $0x68] sm:$0xff] %vm349, %v654
      %673 = vst.msk [vmem:[#allocation2 + $0x70] sm:$0xff] %vm349, %v655
      %674 = vst.msk [vmem:[#allocation2 + $0x78] sm:$0xff] %vm349, %v656
      %675 = vst.msk [vmem:[#allocation2 + $0x80] sm:$0xff] %vm349, %v657
      %676 = vst.msk [vmem:[#allocation2 + $0x88] sm:$0xff] %vm349, %v658
      %p677 = scmp.eq.s32.totalorder %s21, 1
      // Predicated region
      $region45: #{tpu_custom_call.1} parent=39 // pred_check
        %p678 = pneg %p677
      $region46: #{tpu_custom_call.1} parent=39 // pred_check_branch
        %680 = sbr.rel (%p678) target = $region48
      $region47: #{tpu_custom_call.1} parent=39 // pred_region
        %v681 = vld [vmem:[#allocation2] sm:$0xff]
        %v682 = vld [vmem:[#allocation2 + $0x8] sm:$0xff]
        %v683 = vld [vmem:[#allocation2 + $0x10] sm:$0xff]
        %v684 = vld [vmem:[#allocation2 + $0x18] sm:$0xff]
        %v685 = vld [vmem:[#allocation2 + $0x20] sm:$0xff]
        %v686 = vld [vmem:[#allocation2 + $0x28] sm:$0xff]
        %v687 = vld [vmem:[#allocation2 + $0x30] sm:$0xff]
        %v688 = vld [vmem:[#allocation2 + $0x38] sm:$0xff]
        %v689 = vld [vmem:[#allocation2 + $0x40] sm:$0xff]
        %v690 = vld [vmem:[#allocation2 + $0x48] sm:$0xff]
        %v691 = vld [vmem:[#allocation2 + $0x50] sm:$0xff]
        %v692 = vld [vmem:[#allocation2 + $0x58] sm:$0xff]
        %v693 = vld [vmem:[#allocation2 + $0x60] sm:$0xff]
        %v694 = vld [vmem:[#allocation2 + $0x68] sm:$0xff]
        %v695 = vld [vmem:[#allocation2 + $0x70] sm:$0xff]
        %v696 = vld [vmem:[#allocation2 + $0x78] sm:$0xff]
        %v697 = vld [vmem:[#allocation2 + $0x80] sm:$0xff]
        %v698 = vld [vmem:[#allocation2 + $0x88] sm:$0xff]
        %v699 = vpack.c.bf16 %v682, %v681
        %v700 = vpack.c.bf16 %v684, %v683
        %v701 = vpack.c.bf16 %v686, %v685
        %v702 = vpack.c.bf16 %v688, %v687
        %v703 = vpack.c.bf16 %v690, %v689
        %v704 = vpack.c.bf16 %v692, %v691
        %v705 = vpack.c.bf16 %v694, %v693
        %v706 = vpack.c.bf16 %v696, %v695
        %v707 = vpack.c.bf16 %v698, %v697
        %v717 = vunpack.c.l.b16 %v699
        %v718 = vunpack.c.h.b16 %v699
        %v719 = vunpack.c.l.b16 %v700
        %v720 = vunpack.c.h.b16 %v700
        %v721 = vunpack.c.l.b16 %v701
        %v722 = vunpack.c.h.b16 %v701
        %v723 = vunpack.c.l.b16 %v702
        %v724 = vunpack.c.h.b16 %v702
        %v725 = vunpack.c.l.b16 %v703
        %v726 = vunpack.c.h.b16 %v703
        %v727 = vunpack.c.l.b16 %v704
        %v728 = vunpack.c.h.b16 %v704
        %v729 = vunpack.c.l.b16 %v705
        %v730 = vunpack.c.h.b16 %v705
        %v731 = vunpack.c.l.b16 %v706
        %v732 = vunpack.c.h.b16 %v706
        %v733 = vunpack.c.l.b16 %v707
        %v734 = vunpack.c.h.b16 %v707
        %v735 = vpack.c.b16 %v717, %v717
        %v736 = vpack.c.b16 %v718, %v718
        %v737 = vpack.c.b16 %v719, %v719
        %v738 = vpack.c.b16 %v720, %v720
        %v739 = vpack.c.b16 %v721, %v721
        %v740 = vpack.c.b16 %v722, %v722
        %v741 = vpack.c.b16 %v723, %v723
        %v742 = vpack.c.b16 %v724, %v724
        %v743 = vpack.c.b16 %v725, %v725
        %v744 = vpack.c.b16 %v726, %v726
        %v745 = vpack.c.b16 %v727, %v727
        %v746 = vpack.c.b16 %v728, %v728
        %v747 = vpack.c.b16 %v729, %v729
        %v748 = vpack.c.b16 %v730, %v730
        %v749 = vpack.c.b16 %v731, %v731
        %v750 = vpack.c.b16 %v732, %v732
        %v751 = vpack.c.b16 %v733, %v733
        %v752 = vpack.c.b16 %v734, %v734
        %vm771 = vcmask 257024
        %772 = vst.msk [vmem:[%s252] sm:$0xf] %vm771, %v735
        %773 = vst.msk [vmem:[%s252 + $0x4] sm:$0xf] %vm771, %v736
        %774 = vst.msk [vmem:[%s252 + $0x8] sm:$0xf] %vm771, %v737
        %775 = vst.msk [vmem:[%s252 + $0xc] sm:$0xf] %vm771, %v738
        %776 = vst.msk [vmem:[%s252 + $0x10] sm:$0xf] %vm771, %v739
        %777 = vst.msk [vmem:[%s252 + $0x14] sm:$0xf] %vm771, %v740
        %778 = vst.msk [vmem:[%s252 + $0x18] sm:$0xf] %vm771, %v741
        %779 = vst.msk [vmem:[%s252 + $0x1c] sm:$0xf] %vm771, %v742
        %780 = vst.msk [vmem:[%s252 + $0x20] sm:$0xf] %vm771, %v743
        %781 = vst.msk [vmem:[%s252 + $0x24] sm:$0xf] %vm771, %v744
        %782 = vst.msk [vmem:[%s252 + $0x28] sm:$0xf] %vm771, %v745
        %783 = vst.msk [vmem:[%s252 + $0x2c] sm:$0xf] %vm771, %v746
        %784 = vst.msk [vmem:[%s252 + $0x30] sm:$0xf] %vm771, %v747
        %785 = vst.msk [vmem:[%s252 + $0x34] sm:$0xf] %vm771, %v748
        %786 = vst.msk [vmem:[%s252 + $0x38] sm:$0xf] %vm771, %v749
        %787 = vst.msk [vmem:[%s252 + $0x3c] sm:$0xf] %vm771, %v750
        %788 = vst.msk [vmem:[%s252 + $0x40] sm:$0xf] %vm771, %v751
        %789 = vst.msk [vmem:[%s252 + $0x44] sm:$0xf] %vm771, %v752
      $region48: #{tpu_custom_call.1} parent=39 // pred_fallthru
        _
      %p790 = scmp.lt.s32.totalorder %s20, 1
      %s791 = scalar_select %p790, %s20, 1
      %s792 = smul.addr %s791, 18
      %s793 = smul.addr %s792, 4
      %s794 = scalar_lea.vmem %s5, %s793
      // Predicated region
      $region49: #{tpu_custom_call.1} parent=39 // pred_check
        %p795 = pneg %p158
      $region50: #{tpu_custom_call.1} parent=39 // pred_check_branch
        %797 = sbr.rel (%p795) target = $region52
      $region51: #{tpu_custom_call.1} parent=39 // pred_region
        _
      $region52: #{tpu_custom_call.1} parent=39 // pred_fallthru
        _
    $region40: #{tpu_custom_call.1} parent=5 // pred_fallthru
      _
    %p798 = scmp.le.s32.totalorder 2, %s11
    // Predicated region
    $region53: #{tpu_custom_call.1} parent=5 // pred_check
      %p799 = pneg %p798
    $region54: #{tpu_custom_call.1} parent=5 // pred_check_branch
      %801 = sbr.rel (%p799) target = $region56
    $region55: #{tpu_custom_call.1} parent=5 // pred_region
      %s802 = ssub.s32 %s11, 2
      // Predicated region
      $region57: #{tpu_custom_call.1} parent=55 // pred_check
        %p803 = pneg %p164
      $region58: #{tpu_custom_call.1} parent=55 // pred_check_branch
        %805 = sbr.rel (%p803) target = $region60
      $region59: #{tpu_custom_call.1} parent=55 // pred_region
        %p806 = scmp.lt.s32.totalorder %s22, 1
        %s807 = scalar_select %p806, %s22, 1
        %s808 = smul.addr %s807, 18
        %s809 = smul.addr %s808, 4
        %s810 = scalar_lea.vmem %s5, %s809
      $region60: #{tpu_custom_call.1} parent=55 // pred_fallthru
        _
    $region56: #{tpu_custom_call.1} parent=5 // pred_fallthru
      _
  $region6: #{tpu_custom_call.1} parent=0 // loop_footer
    %s15 = sadd.s32 1, %s11
  $region7: #{tpu_custom_call.1} parent=0 // loop_footer_branch
    %10 = sbr.rel target = $region3
  $region8: #{tpu_custom_call.1} parent=0 // loop_exit
    _

// kernel: tpu_custom_call.1
$region0: #{tpu_custom_call.1}
  #allocation0 [shape = 'u32[]', space=smem, size = 0x4, offset = 0x4, fixed_abs, tag = 'smem constant byte address 0x4 - core index']
  #allocation1 [shape = 'u32[144,128]{1,0:T(1,128)}', space=vmem, size = 0x12000, scoped, tag = 'internal scratch']
  #allocation2 [shape = 'f32[144,32]{1,0:T(8,128)}', space=vmem, size = 0x12000, scoped, tag = 'scratch operand']
  %s0 = inlined_call_operand.vmem [shape: f32[2,64,16], index: 0, kind: input, shape index: {}]
  %s1 = inlined_call_operand.vmem [shape: bf16[2,144,32], index: 1, kind: input, shape index: {}]
  %s2 = inlined_call_operand.vmem [shape: bf16[16,32], index: 2, kind: input, shape index: {}]
  %s3 = inlined_call_operand.vmem [shape: f32[1,32], index: 3, kind: input, shape index: {}]
  %s4 = inlined_call_operand.vmem [shape: f32[1,32], index: 4, kind: input, shape index: {}]
  %s5 = inlined_call_operand.vmem [shape: bf16[2,144,32], index: 5, kind: output, shape index: {}]
  %s6 = sld [smem:[#allocation0]]
  $region61: #{tpu_custom_call.1} parent=0
    _
  %s8 = ssub.s32 1, %s6
  %s9 = scalar_select 0, %s8, %s6
  loop: start=0, step=1, limit=6
  $region2: #{tpu_custom_call.1} parent=0 // loop_pre_header
    _
  $region3: #{tpu_custom_call.1} parent=0 // loop_header
    %s11 = sphi 0, %s15
    %p12 = scmp.ge.s32.totalorder %s11, 6
    %s18 = sphi 0, %s30
    %s19 = sphi 0, %s26
    %s20 = sphi 0, %s18
    %s21 = sphi 0, %s19
    %s22 = sphi 0, %s20
    %s23 = sphi 0, %s21
    %s35 = sphi 0, %s37
    %s38 = sphi 0, %s35
    %s39 = sphi 0, %s38
    %s55 = sphi 0, %s39
    %s59 = sphi 0, %s59
    %s61 = sphi 0, %s59
    %s62 = sphi 0, %s61
    %s76 = sphi 0, %s62
    %s80 = sphi 0, %s80
    %s82 = sphi 0, %s80
    %s83 = sphi 0, %s82
    %s97 = sphi 0, %s83
    %s101 = sphi 0, %s101
    %s103 = sphi 0, %s101
    %s104 = sphi 0, %s103
    %s118 = sphi 0, %s104
    %s122 = sphi 0, %s122
    %s124 = sphi 0, %s122
    %s125 = sphi 0, %s124
    %s139 = sphi 0, %s125
    %s145 = sphi 0, %s147
    %s148 = sphi 0, %s145
    %s149 = sphi 0, %s148
    %s165 = sphi 0, %s149
  $region4: #{tpu_custom_call.1} parent=0 // loop_header_branch
    %14 = sbr.rel (%p12) target = $region8
  $region5: #{tpu_custom_call.1} parent=0 // loop_body
    %s16 = ssub.s32 %s11, 1
    %s17 = ssub.s32 %s11, 2
    %s24 = sadd.s32 1, %s19
    %p25 = scmp.ge.s32.totalorder %s24, 2
    %s26 = scalar_select %p25, 0, %s24
    %s27 = sadd.s32 1, %s18
    %s28 = scalar_select %p25, %s27, %s18
    %p29 = scmp.ge.s32.totalorder %s28, 2
    %s30 = scalar_select %p29, 0, %s28
    %s31 = ssub.s32 %s18, %s30
    %s32 = ssub.s32 %s19, %s26
    %s33 = sor.u32 %s31, %s32
    %p34 = scmp.eq.s32.totalorder %s33, 0
    %s36 = sadd.s32 %s35, 1
    %s37 = scalar_select %p34, %s35, %s36
    %p40 = pneg %p34
    %p41 = scmp.eq.s32.totalorder %s11, 3
    %p42 = por %p40, %p41
    %p43 = scmp.ne.s32.totalorder %s35, %s38
    %p44 = scmp.eq.s32.totalorder %s11, 0
    %p45 = por %p43, %p44
    %p46 = scmp.ne.s32.totalorder %s35, %s38
    %p47 = scmp.eq.s32.totalorder %s16, 3
    %p48 = por %p46, %p47
    %p49 = scmp.ne.s32.totalorder %s38, %s39
    %p50 = scmp.eq.s32.totalorder %s16, 0
    %p51 = por %p49, %p50
    %p52 = scmp.ne.s32.totalorder %s38, %s39
    %p53 = scmp.eq.s32.totalorder %s17, 3
    %p54 = por %p52, %p53
    %p56 = scmp.ne.s32.totalorder %s39, %s55
    %p57 = scmp.eq.s32.totalorder %s17, 0
    %p58 = por %p56, %p57
    %s60 = sadd.s32 %s59, 1
    %p63 = scmp.eq.s32.totalorder %s11, 3
    %p64 = scmp.ne.s32.totalorder %s59, %s61
    %p65 = scmp.eq.s32.totalorder %s11, 0
    %p66 = por %p64, %p65
    %p67 = scmp.ne.s32.totalorder %s59, %s61
    %p68 = scmp.eq.s32.totalorder %s16, 3
    %p69 = por %p67, %p68
    %p70 = scmp.ne.s32.totalorder %s61, %s62
    %p71 = scmp.eq.s32.totalorder %s16, 0
    %p72 = por %p70, %p71
    %p73 = scmp.ne.s32.totalorder %s61, %s62
    %p74 = scmp.eq.s32.totalorder %s17, 3
    %p75 = por %p73, %p74
    %p77 = scmp.ne.s32.totalorder %s62, %s76
    %p78 = scmp.eq.s32.totalorder %s17, 0
    %p79 = por %p77, %p78
    %s81 = sadd.s32 %s80, 1
    %p84 = scmp.eq.s32.totalorder %s11, 3
    %p85 = scmp.ne.s32.totalorder %s80, %s82
    %p86 = scmp.eq.s32.totalorder %s11, 0
    %p87 = por %p85, %p86
    %p88 = scmp.ne.s32.totalorder %s80, %s82
    %p89 = scmp.eq.s32.totalorder %s16, 3
    %p90 = por %p88, %p89
    %p91 = scmp.ne.s32.totalorder %s82, %s83
    %p92 = scmp.eq.s32.totalorder %s16, 0
    %p93 = por %p91, %p92
    %p94 = scmp.ne.s32.totalorder %s82, %s83
    %p95 = scmp.eq.s32.totalorder %s17, 3
    %p96 = por %p94, %p95
    %p98 = scmp.ne.s32.totalorder %s83, %s97
    %p99 = scmp.eq.s32.totalorder %s17, 0
    %p100 = por %p98, %p99
    %s102 = sadd.s32 %s101, 1
    %p105 = scmp.eq.s32.totalorder %s11, 3
    %p106 = scmp.ne.s32.totalorder %s101, %s103
    %p107 = scmp.eq.s32.totalorder %s11, 0
    %p108 = por %p106, %p107
    %p109 = scmp.ne.s32.totalorder %s101, %s103
    %p110 = scmp.eq.s32.totalorder %s16, 3
    %p111 = por %p109, %p110
    %p112 = scmp.ne.s32.totalorder %s103, %s104
    %p113 = scmp.eq.s32.totalorder %s16, 0
    %p114 = por %p112, %p113
    %p115 = scmp.ne.s32.totalorder %s103, %s104
    %p116 = scmp.eq.s32.totalorder %s17, 3
    %p117 = por %p115, %p116
    %p119 = scmp.ne.s32.totalorder %s104, %s118
    %p120 = scmp.eq.s32.totalorder %s17, 0
    %p121 = por %p119, %p120
    %s123 = sadd.s32 %s122, 1
    %p126 = scmp.eq.s32.totalorder %s11, 3
    %p127 = scmp.ne.s32.totalorder %s122, %s124
    %p128 = scmp.eq.s32.totalorder %s11, 0
    %p129 = por %p127, %p128
    %p130 = scmp.ne.s32.totalorder %s122, %s124
    %p131 = scmp.eq.s32.totalorder %s16, 3
    %p132 = por %p130, %p131
    %p133 = scmp.ne.s32.totalorder %s124, %s125
    %p134 = scmp.eq.s32.totalorder %s16, 0
    %p135 = por %p133, %p134
    %p136 = scmp.ne.s32.totalorder %s124, %s125
    %p137 = scmp.eq.s32.totalorder %s17, 3
    %p138 = por %p136, %p137
    %p140 = scmp.ne.s32.totalorder %s125, %s139
    %p141 = scmp.eq.s32.totalorder %s17, 0
    %p142 = por %p140, %p141
    %s143 = ssub.s32 %s18, %s30
    %p144 = scmp.eq.s32.totalorder %s143, 0
    %s146 = sadd.s32 %s145, 1
    %s147 = scalar_select %p144, %s145, %s146
    %p150 = pneg %p144
    %p151 = scmp.eq.s32.totalorder %s11, 3
    %p152 = por %p150, %p151
    %p153 = scmp.ne.s32.totalorder %s145, %s148
    %p154 = scmp.eq.s32.totalorder %s11, 0
    %p155 = por %p153, %p154
    %p156 = scmp.ne.s32.totalorder %s145, %s148
    %p157 = scmp.eq.s32.totalorder %s16, 3
    %p158 = por %p156, %p157
    %p159 = scmp.ne.s32.totalorder %s148, %s149
    %p160 = scmp.eq.s32.totalorder %s16, 0
    %p161 = por %p159, %p160
    %p162 = scmp.ne.s32.totalorder %s148, %s149
    %p163 = scmp.eq.s32.totalorder %s17, 3
    %p164 = por %p162, %p163
    %p166 = scmp.ne.s32.totalorder %s149, %s165
    %p167 = scmp.eq.s32.totalorder %s17, 0
    %p168 = por %p166, %p167
    %p169 = scmp.le.s32.totalorder 1, %s11
    %p170 = scmp.lt.s32.totalorder %s11, 5
    %p171 = pnand %p169, %p170
    %p172 = pneg %p171
    // Predicated region
    $region9: #{tpu_custom_call.1} parent=5 // pred_check
      _
    $region10: #{tpu_custom_call.1} parent=5 // pred_check_branch
      %174 = sbr.rel (%p171) target = $region12
    $region11: #{tpu_custom_call.1} parent=5 // pred_region
      %s175 = ssub.s32 %s11, 1
      // Predicated region
      $region13: #{tpu_custom_call.1} parent=11 // pred_check
        %p176 = pneg %p72
      $region14: #{tpu_custom_call.1} parent=11 // pred_check_branch
        %178 = sbr.rel (%p176) target = $region16
      $region15: #{tpu_custom_call.1} parent=11 // pred_region
        _
      $region16: #{tpu_custom_call.1} parent=11 // pred_fallthru
        _
      // Predicated region
      $region17: #{tpu_custom_call.1} parent=11 // pred_check
        %p179 = pneg %p93
      $region18: #{tpu_custom_call.1} parent=11 // pred_check_branch
        %181 = sbr.rel (%p179) target = $region20
      $region19: #{tpu_custom_call.1} parent=11 // pred_region
        _
      $region20: #{tpu_custom_call.1} parent=11 // pred_fallthru
        _
      // Predicated region
      $region21: #{tpu_custom_call.1} parent=11 // pred_check
        %p182 = pneg %p114
      $region22: #{tpu_custom_call.1} parent=11 // pred_check_branch
        %184 = sbr.rel (%p182) target = $region24
      $region23: #{tpu_custom_call.1} parent=11 // pred_region
        _
      $region24: #{tpu_custom_call.1} parent=11 // pred_fallthru
        _
      // Predicated region
      $region25: #{tpu_custom_call.1} parent=11 // pred_check
        %p185 = pneg %p135
      $region26: #{tpu_custom_call.1} parent=11 // pred_check_branch
        %187 = sbr.rel (%p185) target = $region28
      $region27: #{tpu_custom_call.1} parent=11 // pred_region
        _
      $region28: #{tpu_custom_call.1} parent=11 // pred_fallthru
        _
    $region12: #{tpu_custom_call.1} parent=5 // pred_fallthru
      _
    %p188 = scmp.lt.s32.totalorder %s11, 4
    // Predicated region
    $region29: #{tpu_custom_call.1} parent=5 // pred_check
      %p189 = pneg %p188
    $region30: #{tpu_custom_call.1} parent=5 // pred_check_branch
      %191 = sbr.rel (%p189) target = $region32
    $region31: #{tpu_custom_call.1} parent=5 // pred_region
      // Predicated region
      $region33: #{tpu_custom_call.1} parent=31 // pred_check
        %p192 = pneg %p45
      $region34: #{tpu_custom_call.1} parent=31 // pred_check_branch
        %194 = sbr.rel (%p192) target = $region36
      $region35: #{tpu_custom_call.1} parent=31 // pred_region
        %s195 = smul.u32 4, %s19
        %p196 = scmp.lt.s32.totalorder %s18, 1
        %s197 = scalar_select %p196, %s18, 1
        %p198 = scmp.lt.s32.totalorder %s195, 7
        %s199 = scalar_select %p198, %s195, 7
        %s200 = smul.addr %s197, 8
        %s201 = sadd.s32 %s199, %s200
        %s202 = smul.addr %s201, 8
        %s203 = scalar_lea.vmem %s0, %s202
        %s204 = smul.u32 4, %s19
      $region36: #{tpu_custom_call.1} parent=31 // pred_fallthru
        _
    $region32: #{tpu_custom_call.1} parent=5 // pred_fallthru
      _
    %p205 = scmp.le.s32.totalorder 1, %s11
    %p206 = scmp.lt.s32.totalorder %s11, 5
    %p207 = pnand %p205, %p206
    %p208 = pneg %p207
    // Predicated region
    $region37: #{tpu_custom_call.1} parent=5 // pred_check
      _
    $region38: #{tpu_custom_call.1} parent=5 // pred_check_branch
      %210 = sbr.rel (%p207) target = $region40
    $region39: #{tpu_custom_call.1} parent=5 // pred_region
      %s211 = ssub.s32 %s11, 1
      %s212 = smul.u32 4, %s21
      %p213 = scmp.lt.s32.totalorder %s20, 1
      %s214 = scalar_select %p213, %s20, 1
      %p215 = scmp.lt.s32.totalorder %s212, 7
      %s216 = scalar_select %p215, %s212, 7
      %s217 = smul.addr %s214, 8
      %s218 = sadd.s32 %s216, %s217
      %s219 = smul.addr %s218, 8
      %s220 = scalar_lea.vmem %s0, %s219
      %p221 = pneg %p51
      %p222 = pneg %p48
      %p223 = pneg %p72
      %p224 = pneg %p69
      %p225 = pneg %p93
      %p226 = pneg %p90
      %p227 = pneg %p114
      %p228 = pneg %p111
      %p229 = pneg %p135
      %p230 = pneg %p132
      %p231 = pneg %p161
      %p232 = pneg %p158
      %p233 = scmp.lt.s32.totalorder %s20, 1
      %s234 = scalar_select %p233, %s20, 1
      %s235 = smul.addr %s234, 18
      %s236 = smul.addr %s235, 4
      %s237 = scalar_lea.vmem %s5, %s236
      %s238 = smul.u32 4, %s21
      %p239 = scmp.lt.s32.totalorder %s20, 1
      %s240 = scalar_select %p239, %s20, 1
      %p241 = scmp.lt.s32.totalorder %s238, 7
      %s242 = scalar_select %p241, %s238, 7
      %s243 = smul.addr %s240, 8
      %s244 = sadd.s32 %s242, %s243
      %s245 = smul.addr %s244, 8
      %s246 = scalar_lea.vmem %s0, %s245
      %s247 = smul.u32 4, %s21
      %p248 = scmp.lt.s32.totalorder %s20, 1
      %s249 = scalar_select %p248, %s20, 1
      %s250 = smul.addr %s249, 18
      %s251 = smul.addr %s250, 4
      %s252 = scalar_lea.vmem %s5, %s251
      %p254 = scmp.eq.s32.totalorder %s21, 0
      // Predicated region
      $region41: #{tpu_custom_call.1} parent=39 // pred_check
        %p255 = pneg %p254
      $region42: #{tpu_custom_call.1} parent=39 // pred_check_branch
        %257 = sbr.rel (%p255) target = $region44
      $region43: #{tpu_custom_call.1} parent=39 // pred_region
        %vm258 = vcmask 261120
        %259 = vst.msk [vmem:[#allocation2] sm:$0xff] %vm258, 0.0
        %260 = vst.msk [vmem:[#allocation2 + $0x8] sm:$0xff] %vm258, 0.0
        %261 = vst.msk [vmem:[#allocation2 + $0x10] sm:$0xff] %vm258, 0.0
        %262 = vst.msk [vmem:[#allocation2 + $0x18] sm:$0xff] %vm258, 0.0
        %263 = vst.msk [vmem:[#allocation2 + $0x20] sm:$0xff] %vm258, 0.0
        %264 = vst.msk [vmem:[#allocation2 + $0x28] sm:$0xff] %vm258, 0.0
        %265 = vst.msk [vmem:[#allocation2 + $0x30] sm:$0xff] %vm258, 0.0
        %266 = vst.msk [vmem:[#allocation2 + $0x38] sm:$0xff] %vm258, 0.0
        %267 = vst.msk [vmem:[#allocation2 + $0x40] sm:$0xff] %vm258, 0.0
        %268 = vst.msk [vmem:[#allocation2 + $0x48] sm:$0xff] %vm258, 0.0
        %269 = vst.msk [vmem:[#allocation2 + $0x50] sm:$0xff] %vm258, 0.0
        %270 = vst.msk [vmem:[#allocation2 + $0x58] sm:$0xff] %vm258, 0.0
        %271 = vst.msk [vmem:[#allocation2 + $0x60] sm:$0xff] %vm258, 0.0
        %272 = vst.msk [vmem:[#allocation2 + $0x68] sm:$0xff] %vm258, 0.0
        %273 = vst.msk [vmem:[#allocation2 + $0x70] sm:$0xff] %vm258, 0.0
        %274 = vst.msk [vmem:[#allocation2 + $0x78] sm:$0xff] %vm258, 0.0
        %275 = vst.msk [vmem:[#allocation2 + $0x80] sm:$0xff] %vm258, 0.0
        %276 = vst.msk [vmem:[#allocation2 + $0x88] sm:$0xff] %vm258, 0.0
      $region44: #{tpu_custom_call.1} parent=39 // pred_fallthru
        _
      %v277 = vld [vmem:[%s246] sm:$0xff]
      %v278 = vld [vmem:[%s246 + $0x8] sm:$0xff]
      %v279 = vld [vmem:[%s246 + $0x10] sm:$0xff]
      %v280 = vld [vmem:[%s246 + $0x18] sm:$0xff]
      %v281 = vpack.c.bf16 %v278, %v277
      %v282 = vpack.c.bf16 %v280, %v279
      %v283 = vld [vmem:[%s2] sm:$0xf]
      %v284 = vld [vmem:[%s2 + $0x4] sm:$0xf]
      %v287 = vunpack.c.l.b16 %v283
      %v288 = vunpack.c.l.b16 %v284
      %v289 = vpack.c.b16 %v288, %v287
      %vm291 = vcmask 130048
      %v293 = vsel %vm291, %v281, 0
      %v296 = vsel %vm291, %v282, 0
      %298 = vmatprep.subr.bf16.mxu0 0
      %299 = vmatpush1.bf16.msra.mxu0 0
      %300 = vmatprep.subr.bf16.mxu0 0
      %301 = vmatpush1.bf16.msra.mxu0 0
      %302 = vmatprep.subr.bf16.mxu0 0
      %303 = vmatpush1.bf16.msra.mxu0 0
      %304 = vmatprep.subr.bf16.mxu0 0
      %305 = vmatpush1.bf16.msra.mxu0 0
      %306 = vmatprep.subr.bf16.mxu0 0
      %307 = vmatpush1.bf16.msra.mxu0 0
      %308 = vmatprep.subr.bf16.mxu0 0
      %309 = vmatpush1.bf16.msra.mxu0 0
      %310 = vmatprep.subr.bf16.mxu0 0
      %311 = vmatpush1.bf16.msra.mxu0 0
      %312 = vmatprep.subr.bf16.mxu0 0
      %313 = vmatpush1.bf16.msra.mxu0 %v289
      %314 = vmatprep.subr.bf16.mxu0 0
      %315 = vmatpush2.bf16.msra.mxu0 0
      %316 = vmatprep.subr.bf16.mxu0 0
      %317 = vmatpush2.bf16.msra.mxu0 0
      %318 = vmatprep.subr.bf16.mxu0 0
      %319 = vmatpush2.bf16.msra.mxu0 0
      %320 = vmatprep.subr.bf16.mxu0 0
      %321 = vmatpush2.bf16.msra.mxu0 0
      %322 = vmatprep.subr.bf16.mxu0 0
      %323 = vmatpush2.bf16.msra.mxu0 0
      %324 = vmatprep.subr.bf16.mxu0 0
      %325 = vmatpush2.bf16.msra.mxu0 0
      %326 = vmatprep.subr.bf16.mxu0 0
      %327 = vmatpush2.bf16.msra.mxu0 0
      %328 = vmatprep.subr.bf16.mxu0 0
      %329 = vmatpush2.bf16.msra.mxu0 0
      %330 = vmatprep.mubr.bf16.mxu0 0
      %331 = vmatmul.mubr.bf16.gmra.mxu0 %v293
      %v332 = vpop.f32.mrf.mxu0
      %v333 = vadd.f32 0.0, %v332
      %v334 = vpop.f32.mrf.mxu0
      %v335 = vpop.f32.mrf.mxu0
      %v336 = vadd.f32 0.0, %v335
      %v337 = vpop.f32.mrf.mxu0
      %338 = vmatprep.mubr.bf16.mxu0 0
      %339 = vmatmul.mubr.bf16.gmra.mxu0 %v296
      %v340 = vpop.f32.mrf.mxu0
      %v341 = vadd.f32 0.0, %v340
      %v342 = vpop.f32.mrf.mxu0
      %v343 = vpop.f32.mrf.mxu0
      %v344 = vadd.f32 0.0, %v343
      %v345 = vpop.f32.mrf.mxu0
      %346 = vdwg.mxu0
      %v347 = vld [vmem:[%s3] sm:$0x1]
      %v348 = vld [vmem:[%s4] sm:$0x1]
      %vm349 = vcmask 261120
      %v350 = vsel %vm349, %v333, 0.0
      %351 = vadd.xlane.f32.xlu0 %v350
      %v352 = vpop.xlane.xlu0 %351
      %v353 = vsel %vm349, %v336, 0.0
      %354 = vadd.xlane.f32.xlu0 %v353
      %v355 = vpop.xlane.xlu0 %354
      %v356 = vsel %vm349, %v341, 0.0
      %357 = vadd.xlane.f32.xlu0 %v356
      %v358 = vpop.xlane.xlu0 %357
      %v359 = vsel %vm349, %v344, 0.0
      %360 = vadd.xlane.f32.xlu0 %v359
      %v361 = vpop.xlane.xlu0 %360
      %v362 = vrcp.pop 32.0
      %v363 = vmul.f32 %v352, %v362
      %v364 = vmul.f32 %v355, %v362
      %v365 = vmul.f32 %v358, %v362
      %v366 = vmul.f32 %v361, %v362
      %v367 = vsub.f32 %v333, %v363
      %v368 = vsub.f32 %v336, %v364
      %v369 = vsub.f32 %v341, %v365
      %v370 = vsub.f32 %v344, %v366
      %v371 = vmul.f32 %v367, %v367
      %v372 = vmul.f32 %v368, %v368
      %v373 = vmul.f32 %v369, %v369
      %v374 = vmul.f32 %v370, %v370
      %v375 = vsel %vm349, %v371, 0.0
      %376 = vadd.xlane.f32.xlu0 %v375
      %v377 = vpop.xlane.xlu0 %376
      %v378 = vsel %vm349, %v372, 0.0
      %379 = vadd.xlane.f32.xlu0 %v378
      %v380 = vpop.xlane.xlu0 %379
      %v381 = vsel %vm349, %v373, 0.0
      %382 = vadd.xlane.f32.xlu0 %v381
      %v383 = vpop.xlane.xlu0 %382
      %v384 = vsel %vm349, %v374, 0.0
      %385 = vadd.xlane.f32.xlu0 %v384
      %v386 = vpop.xlane.xlu0 %385
      %v387 = vmul.f32 %v377, %v362
      %v388 = vmul.f32 %v380, %v362
      %v389 = vmul.f32 %v383, %v362
      %v390 = vmul.f32 %v386, %v362
      %v391 = vadd.f32 %v387, 1e-06
      %v392 = vadd.f32 %v388, 1e-06
      %v393 = vadd.f32 %v389, 1e-06
      %v394 = vadd.f32 %v390, 1e-06
      %v395 = vrsqrt.pop %v391
      %v396 = vrsqrt.pop %v392
      %v397 = vrsqrt.pop %v393
      %v398 = vrsqrt.pop %v394
      %v399 = vmul.f32 %v367, %v395
      %v400 = vmul.f32 %v368, %v396
      %v401 = vmul.f32 %v369, %v397
      %v402 = vmul.f32 %v370, %v398
      %v404 = vlaneseq
      %v405 = vshrl.u32 %v404, 7
      %v406 = vsub.s32 0, %v405
      %v407 = vrot.slane %v347, %v406
      %v409 = vmul.f32 %v399, %v407
      %v410 = vmul.f32 %v400, %v407
      %v411 = vmul.f32 %v401, %v407
      %v412 = vmul.f32 %v402, %v407
      %v414 = vlaneseq
      %v415 = vshrl.u32 %v414, 7
      %v416 = vsub.s32 0, %v415
      %v417 = vrot.slane %v348, %v416
      %v419 = vadd.f32 %v409, %v417
      %v420 = vadd.f32 %v410, %v417
      %v421 = vadd.f32 %v411, %v417
      %v422 = vadd.f32 %v412, %v417
      %s423 = smul.u32 %s21, 18
      %s424 = smul.addr %s423, 4
      %s425 = scalar_lea.vmem %s1, %s424
      %v426 = vld [vmem:[%s425] sm:$0xf]
      %v427 = vld [vmem:[%s425 + $0x4] sm:$0xf]
      %v428 = vld [vmem:[%s425 + $0x8] sm:$0xf]
      %v429 = vld [vmem:[%s425 + $0xc] sm:$0xf]
      %v430 = vld [vmem:[%s425 + $0x10] sm:$0xf]
      %v431 = vld [vmem:[%s425 + $0x14] sm:$0xf]
      %v432 = vld [vmem:[%s425 + $0x18] sm:$0xf]
      %v433 = vld [vmem:[%s425 + $0x1c] sm:$0xf]
      %v434 = vld [vmem:[%s425 + $0x20] sm:$0xf]
      %v435 = vld [vmem:[%s425 + $0x24] sm:$0xf]
      %v436 = vld [vmem:[%s425 + $0x28] sm:$0xf]
      %v437 = vld [vmem:[%s425 + $0x2c] sm:$0xf]
      %v438 = vld [vmem:[%s425 + $0x30] sm:$0xf]
      %v439 = vld [vmem:[%s425 + $0x34] sm:$0xf]
      %v440 = vld [vmem:[%s425 + $0x38] sm:$0xf]
      %v441 = vld [vmem:[%s425 + $0x3c] sm:$0xf]
      %v442 = vld [vmem:[%s425 + $0x40] sm:$0xf]
      %v443 = vld [vmem:[%s425 + $0x44] sm:$0xf]
      %v444 = vld [vmem:[#allocation2] sm:$0xff]
      %v445 = vld [vmem:[#allocation2 + $0x8] sm:$0xff]
      %v446 = vld [vmem:[#allocation2 + $0x10] sm:$0xff]
      %v447 = vld [vmem:[#allocation2 + $0x18] sm:$0xff]
      %v448 = vld [vmem:[#allocation2 + $0x20] sm:$0xff]
      %v449 = vld [vmem:[#allocation2 + $0x28] sm:$0xff]
      %v450 = vld [vmem:[#allocation2 + $0x30] sm:$0xff]
      %v451 = vld [vmem:[#allocation2 + $0x38] sm:$0xff]
      %v452 = vld [vmem:[#allocation2 + $0x40] sm:$0xff]
      %v453 = vld [vmem:[#allocation2 + $0x48] sm:$0xff]
      %v454 = vld [vmem:[#allocation2 + $0x50] sm:$0xff]
      %v455 = vld [vmem:[#allocation2 + $0x58] sm:$0xff]
      %v456 = vld [vmem:[#allocation2 + $0x60] sm:$0xff]
      %v457 = vld [vmem:[#allocation2 + $0x68] sm:$0xff]
      %v458 = vld [vmem:[#allocation2 + $0x70] sm:$0xff]
      %v459 = vld [vmem:[#allocation2 + $0x78] sm:$0xff]
      %v460 = vld [vmem:[#allocation2 + $0x80] sm:$0xff]
      %v461 = vld [vmem:[#allocation2 + $0x88] sm:$0xff]
      %v462 = vpack.c.bf16 %v420, %v419
      %v463 = vpack.c.bf16 %v422, %v421
      %v482 = vunpack.c.l.b16 %v426
      %v483 = vunpack.c.l.b16 %v427
      %v484 = vunpack.c.l.b16 %v428
      %v485 = vunpack.c.l.b16 %v429
      %v486 = vunpack.c.l.b16 %v430
      %v487 = vunpack.c.l.b16 %v431
      %v488 = vunpack.c.l.b16 %v432
      %v489 = vunpack.c.l.b16 %v433
      %v490 = vunpack.c.l.b16 %v434
      %v491 = vunpack.c.l.b16 %v435
      %v492 = vunpack.c.l.b16 %v436
      %v493 = vunpack.c.l.b16 %v437
      %v494 = vunpack.c.l.b16 %v438
      %v495 = vunpack.c.l.b16 %v439
      %v496 = vunpack.c.l.b16 %v440
      %v497 = vunpack.c.l.b16 %v441
      %v498 = vunpack.c.l.b16 %v442
      %v499 = vunpack.c.l.b16 %v443
      %v500 = vpack.c.b16 %v483, %v482
      %v501 = vpack.c.b16 %v485, %v484
      %v502 = vpack.c.b16 %v487, %v486
      %v503 = vpack.c.b16 %v489, %v488
      %v504 = vpack.c.b16 %v491, %v490
      %v505 = vpack.c.b16 %v493, %v492
      %v506 = vpack.c.b16 %v495, %v494
      %v507 = vpack.c.b16 %v497, %v496
      %v508 = vpack.c.b16 %v499, %v498
      %v510 = vsel %vm349, %v500, 0
      %v513 = vsel %vm349, %v501, 0
      %v516 = vsel %vm349, %v502, 0
      %v519 = vsel %vm349, %v503, 0
      %v522 = vsel %vm349, %v504, 0
      %v525 = vsel %vm349, %v505, 0
      %v528 = vsel %vm349, %v506, 0
      %v531 = vsel %vm349, %v507, 0
      %v534 = vsel %vm349, %v508, 0
      %536 = vmatprep.subr.bf16.mxu0 0
      %537 = vmatpush1.bf16.msra.mxu0 0
      %538 = vmatprep.subr.bf16.mxu0 0
      %539 = vmatpush1.bf16.msra.mxu0 0
      %540 = vmatprep.subr.bf16.mxu0 0
      %541 = vmatpush1.bf16.msra.mxu0 0
      %542 = vmatprep.subr.bf16.mxu0 0
      %543 = vmatpush1.bf16.msra.mxu0 0
      %544 = vmatprep.subr.bf16.mxu0 0
      %545 = vmatpush1.bf16.msra.mxu0 0
      %546 = vmatprep.subr.bf16.mxu0 0
      %547 = vmatpush1.bf16.msra.mxu0 0
      %548 = vmatprep.subr.bf16.mxu0 0
      %549 = vmatpush1.bf16.msra.mxu0 %v463
      %550 = vmatprep.subr.bf16.mxu0 0
      %551 = vmatpush1.bf16.msra.mxu0 %v462
      %552 = vmatprep.subr.bf16.mxu0 0
      %553 = vmatpush2.bf16.msra.mxu0 0
      %554 = vmatprep.subr.bf16.mxu0 0
      %555 = vmatpush2.bf16.msra.mxu0 0
      %556 = vmatprep.subr.bf16.mxu0 0
      %557 = vmatpush2.bf16.msra.mxu0 0
      %558 = vmatprep.subr.bf16.mxu0 0
      %559 = vmatpush2.bf16.msra.mxu0 0
      %560 = vmatprep.subr.bf16.mxu0 0
      %561 = vmatpush2.bf16.msra.mxu0 0
      %562 = vmatprep.subr.bf16.mxu0 0
      %563 = vmatpush2.bf16.msra.mxu0 0
      %564 = vmatprep.subr.bf16.mxu0 0
      %565 = vmatpush2.bf16.msra.mxu0 0
      %566 = vmatprep.subr.bf16.mxu0 0
      %567 = vmatpush2.bf16.msra.mxu0 0
      %568 = vmatprep.mubr.bf16.mxu0 0
      %569 = vmatmul.mubr.bf16.gmra.mxu0 %v510
      %v570 = vpop.f32.mrf.mxu0
      %v571 = vadd.f32 0.0, %v570
      %v572 = vpop.f32.mrf.mxu0
      %v573 = vpop.f32.mrf.mxu0
      %v574 = vadd.f32 0.0, %v573
      %v575 = vpop.f32.mrf.mxu0
      %576 = vmatprep.mubr.bf16.mxu0 0
      %577 = vmatmul.mubr.bf16.gmra.mxu0 %v513
      %v578 = vpop.f32.mrf.mxu0
      %v579 = vadd.f32 0.0, %v578
      %v580 = vpop.f32.mrf.mxu0
      %v581 = vpop.f32.mrf.mxu0
      %v582 = vadd.f32 0.0, %v581
      %v583 = vpop.f32.mrf.mxu0
      %584 = vmatprep.mubr.bf16.mxu0 0
      %585 = vmatmul.mubr.bf16.gmra.mxu0 %v516
      %v586 = vpop.f32.mrf.mxu0
      %v587 = vadd.f32 0.0, %v586
      %v588 = vpop.f32.mrf.mxu0
      %v589 = vpop.f32.mrf.mxu0
      %v590 = vadd.f32 0.0, %v589
      %v591 = vpop.f32.mrf.mxu0
      %592 = vmatprep.mubr.bf16.mxu0 0
      %593 = vmatmul.mubr.bf16.gmra.mxu0 %v519
      %v594 = vpop.f32.mrf.mxu0
      %v595 = vadd.f32 0.0, %v594
      %v596 = vpop.f32.mrf.mxu0
      %v597 = vpop.f32.mrf.mxu0
      %v598 = vadd.f32 0.0, %v597
      %v599 = vpop.f32.mrf.mxu0
      %600 = vmatprep.mubr.bf16.mxu0 0
      %601 = vmatmul.mubr.bf16.gmra.mxu0 %v522
      %v602 = vpop.f32.mrf.mxu0
      %v603 = vadd.f32 0.0, %v602
      %v604 = vpop.f32.mrf.mxu0
      %v605 = vpop.f32.mrf.mxu0
      %v606 = vadd.f32 0.0, %v605
      %v607 = vpop.f32.mrf.mxu0
      %608 = vmatprep.mubr.bf16.mxu0 0
      %609 = vmatmul.mubr.bf16.gmra.mxu0 %v525
      %v610 = vpop.f32.mrf.mxu0
      %v611 = vadd.f32 0.0, %v610
      %v612 = vpop.f32.mrf.mxu0
      %v613 = vpop.f32.mrf.mxu0
      %v614 = vadd.f32 0.0, %v613
      %v615 = vpop.f32.mrf.mxu0
      %616 = vmatprep.mubr.bf16.mxu0 0
      %617 = vmatmul.mubr.bf16.gmra.mxu0 %v528
      %v618 = vpop.f32.mrf.mxu0
      %v619 = vadd.f32 0.0, %v618
      %v620 = vpop.f32.mrf.mxu0
      %v621 = vpop.f32.mrf.mxu0
      %v622 = vadd.f32 0.0, %v621
      %v623 = vpop.f32.mrf.mxu0
      %624 = vmatprep.mubr.bf16.mxu0 0
      %625 = vmatmul.mubr.bf16.gmra.mxu0 %v531
      %v626 = vpop.f32.mrf.mxu0
      %v627 = vadd.f32 0.0, %v626
      %v628 = vpop.f32.mrf.mxu0
      %v629 = vpop.f32.mrf.mxu0
      %v630 = vadd.f32 0.0, %v629
      %v631 = vpop.f32.mrf.mxu0
      %632 = vmatprep.mubr.bf16.mxu0 0
      %633 = vmatmul.mubr.bf16.gmra.mxu0 %v534
      %v634 = vpop.f32.mrf.mxu0
      %v635 = vadd.f32 0.0, %v634
      %v636 = vpop.f32.mrf.mxu0
      %v637 = vpop.f32.mrf.mxu0
      %v638 = vadd.f32 0.0, %v637
      %v639 = vpop.f32.mrf.mxu0
      %640 = vdwg.mxu0
      %v641 = vadd.f32 %v444, %v571
      %v642 = vadd.f32 %v445, %v574
      %v643 = vadd.f32 %v446, %v579
      %v644 = vadd.f32 %v447, %v582
      %v645 = vadd.f32 %v448, %v587
      %v646 = vadd.f32 %v449, %v590
      %v647 = vadd.f32 %v450, %v595
      %v648 = vadd.f32 %v451, %v598
      %v649 = vadd.f32 %v452, %v603
      %v650 = vadd.f32 %v453, %v606
      %v651 = vadd.f32 %v454, %v611
      %v652 = vadd.f32 %v455, %v614
      %v653 = vadd.f32 %v456, %v619
      %v654 = vadd.f32 %v457, %v622
      %v655 = vadd.f32 %v458, %v627
      %v656 = vadd.f32 %v459, %v630
      %v657 = vadd.f32 %v460, %v635
      %v658 = vadd.f32 %v461, %v638
      %659 = vst.msk [vmem:[#allocation2] sm:$0xff] %vm349, %v641
      %660 = vst.msk [vmem:[#allocation2 + $0x8] sm:$0xff] %vm349, %v642
      %661 = vst.msk [vmem:[#allocation2 + $0x10] sm:$0xff] %vm349, %v643
      %662 = vst.msk [vmem:[#allocation2 + $0x18] sm:$0xff] %vm349, %v644
      %663 = vst.msk [vmem:[#allocation2 + $0x20] sm:$0xff] %vm349, %v645
      %664 = vst.msk [vmem:[#allocation2 + $0x28] sm:$0xff] %vm349, %v646
      %665 = vst.msk [vmem:[#allocation2 + $0x30] sm:$0xff] %vm349, %v647
      %666 = vst.msk [vmem:[#allocation2 + $0x38] sm:$0xff] %vm349, %v648
      %667 = vst.msk [vmem:[#allocation2 + $0x40] sm:$0xff] %vm349, %v649
      %668 = vst.msk [vmem:[#allocation2 + $0x48] sm:$0xff] %vm349, %v650
      %669 = vst.msk [vmem:[#allocation2 + $0x50] sm:$0xff] %vm349, %v651
      %670 = vst.msk [vmem:[#allocation2 + $0x58] sm:$0xff] %vm349, %v652
      %671 = vst.msk [vmem:[#allocation2 + $0x60] sm:$0xff] %vm349, %v653
      %672 = vst.msk [vmem:[#allocation2 + $0x68] sm:$0xff] %vm349, %v654
      %673 = vst.msk [vmem:[#allocation2 + $0x70] sm:$0xff] %vm349, %v655
      %674 = vst.msk [vmem:[#allocation2 + $0x78] sm:$0xff] %vm349, %v656
      %675 = vst.msk [vmem:[#allocation2 + $0x80] sm:$0xff] %vm349, %v657
      %676 = vst.msk [vmem:[#allocation2 + $0x88] sm:$0xff] %vm349, %v658
      %p677 = scmp.eq.s32.totalorder %s21, 1
      // Predicated region
      $region45: #{tpu_custom_call.1} parent=39 // pred_check
        %p678 = pneg %p677
      $region46: #{tpu_custom_call.1} parent=39 // pred_check_branch
        %680 = sbr.rel (%p678) target = $region48
      $region47: #{tpu_custom_call.1} parent=39 // pred_region
        %v681 = vld [vmem:[#allocation2] sm:$0xff]
        %v682 = vld [vmem:[#allocation2 + $0x8] sm:$0xff]
        %v683 = vld [vmem:[#allocation2 + $0x10] sm:$0xff]
        %v684 = vld [vmem:[#allocation2 + $0x18] sm:$0xff]
        %v685 = vld [vmem:[#allocation2 + $0x20] sm:$0xff]
        %v686 = vld [vmem:[#allocation2 + $0x28] sm:$0xff]
        %v687 = vld [vmem:[#allocation2 + $0x30] sm:$0xff]
        %v688 = vld [vmem:[#allocation2 + $0x38] sm:$0xff]
        %v689 = vld [vmem:[#allocation2 + $0x40] sm:$0xff]
        %v690 = vld [vmem:[#allocation2 + $0x48] sm:$0xff]
        %v691 = vld [vmem:[#allocation2 + $0x50] sm:$0xff]
        %v692 = vld [vmem:[#allocation2 + $0x58] sm:$0xff]
        %v693 = vld [vmem:[#allocation2 + $0x60] sm:$0xff]
        %v694 = vld [vmem:[#allocation2 + $0x68] sm:$0xff]
        %v695 = vld [vmem:[#allocation2 + $0x70] sm:$0xff]
        %v696 = vld [vmem:[#allocation2 + $0x78] sm:$0xff]
        %v697 = vld [vmem:[#allocation2 + $0x80] sm:$0xff]
        %v698 = vld [vmem:[#allocation2 + $0x88] sm:$0xff]
        %v699 = vpack.c.bf16 %v682, %v681
        %v700 = vpack.c.bf16 %v684, %v683
        %v701 = vpack.c.bf16 %v686, %v685
        %v702 = vpack.c.bf16 %v688, %v687
        %v703 = vpack.c.bf16 %v690, %v689
        %v704 = vpack.c.bf16 %v692, %v691
        %v705 = vpack.c.bf16 %v694, %v693
        %v706 = vpack.c.bf16 %v696, %v695
        %v707 = vpack.c.bf16 %v698, %v697
        %v717 = vunpack.c.l.b16 %v699
        %v718 = vunpack.c.h.b16 %v699
        %v719 = vunpack.c.l.b16 %v700
        %v720 = vunpack.c.h.b16 %v700
        %v721 = vunpack.c.l.b16 %v701
        %v722 = vunpack.c.h.b16 %v701
        %v723 = vunpack.c.l.b16 %v702
        %v724 = vunpack.c.h.b16 %v702
        %v725 = vunpack.c.l.b16 %v703
        %v726 = vunpack.c.h.b16 %v703
        %v727 = vunpack.c.l.b16 %v704
        %v728 = vunpack.c.h.b16 %v704
        %v729 = vunpack.c.l.b16 %v705
        %v730 = vunpack.c.h.b16 %v705
        %v731 = vunpack.c.l.b16 %v706
        %v732 = vunpack.c.h.b16 %v706
        %v733 = vunpack.c.l.b16 %v707
        %v734 = vunpack.c.h.b16 %v707
        %v735 = vpack.c.b16 %v717, %v717
        %v736 = vpack.c.b16 %v718, %v718
        %v737 = vpack.c.b16 %v719, %v719
        %v738 = vpack.c.b16 %v720, %v720
        %v739 = vpack.c.b16 %v721, %v721
        %v740 = vpack.c.b16 %v722, %v722
        %v741 = vpack.c.b16 %v723, %v723
        %v742 = vpack.c.b16 %v724, %v724
        %v743 = vpack.c.b16 %v725, %v725
        %v744 = vpack.c.b16 %v726, %v726
        %v745 = vpack.c.b16 %v727, %v727
        %v746 = vpack.c.b16 %v728, %v728
        %v747 = vpack.c.b16 %v729, %v729
        %v748 = vpack.c.b16 %v730, %v730
        %v749 = vpack.c.b16 %v731, %v731
        %v750 = vpack.c.b16 %v732, %v732
        %v751 = vpack.c.b16 %v733, %v733
        %v752 = vpack.c.b16 %v734, %v734
        %vm771 = vcmask 257024
        %772 = vst.msk [vmem:[%s252] sm:$0xf] %vm771, %v735
        %773 = vst.msk [vmem:[%s252 + $0x4] sm:$0xf] %vm771, %v736
        %774 = vst.msk [vmem:[%s252 + $0x8] sm:$0xf] %vm771, %v737
        %775 = vst.msk [vmem:[%s252 + $0xc] sm:$0xf] %vm771, %v738
        %776 = vst.msk [vmem:[%s252 + $0x10] sm:$0xf] %vm771, %v739
        %777 = vst.msk [vmem:[%s252 + $0x14] sm:$0xf] %vm771, %v740
        %778 = vst.msk [vmem:[%s252 + $0x18] sm:$0xf] %vm771, %v741
        %779 = vst.msk [vmem:[%s252 + $0x1c] sm:$0xf] %vm771, %v742
        %780 = vst.msk [vmem:[%s252 + $0x20] sm:$0xf] %vm771, %v743
        %781 = vst.msk [vmem:[%s252 + $0x24] sm:$0xf] %vm771, %v744
        %782 = vst.msk [vmem:[%s252 + $0x28] sm:$0xf] %vm771, %v745
        %783 = vst.msk [vmem:[%s252 + $0x2c] sm:$0xf] %vm771, %v746
        %784 = vst.msk [vmem:[%s252 + $0x30] sm:$0xf] %vm771, %v747
        %785 = vst.msk [vmem:[%s252 + $0x34] sm:$0xf] %vm771, %v748
        %786 = vst.msk [vmem:[%s252 + $0x38] sm:$0xf] %vm771, %v749
        %787 = vst.msk [vmem:[%s252 + $0x3c] sm:$0xf] %vm771, %v750
        %788 = vst.msk [vmem:[%s252 + $0x40] sm:$0xf] %vm771, %v751
        %789 = vst.msk [vmem:[%s252 + $0x44] sm:$0xf] %vm771, %v752
      $region48: #{tpu_custom_call.1} parent=39 // pred_fallthru
        _
      %p790 = scmp.lt.s32.totalorder %s20, 1
      %s791 = scalar_select %p790, %s20, 1
      %s792 = smul.addr %s791, 18
      %s793 = smul.addr %s792, 4
      %s794 = scalar_lea.vmem %s5, %s793
      // Predicated region
      $region49: #{tpu_custom_call.1} parent=39 // pred_check
        %p795 = pneg %p158
      $region50: #{tpu_custom_call.1} parent=39 // pred_check_branch
        %797 = sbr.rel (%p795) target = $region52
      $region51: #{tpu_custom_call.1} parent=39 // pred_region
        _
      $region52: #{tpu_custom_call.1} parent=39 // pred_fallthru
        _
    $region40: #{tpu_custom_call.1} parent=5 // pred_fallthru
      _
    %p798 = scmp.le.s32.totalorder 2, %s11
    // Predicated region
    $region53: #{tpu_custom_call.1} parent=5 // pred_check
      %p799 = pneg %p798
    $region54: #{tpu_custom_call.1} parent=5 // pred_check_branch
      %801 = sbr.rel (%p799) target = $region56
    $region55: #{tpu_custom_call.1} parent=5 // pred_region
      %s802 = ssub.s32 %s11, 2
      // Predicated region
      $region57: #{tpu_custom_call.1} parent=55 // pred_check
        %p803 = pneg %p164
      $region58: #{tpu_custom_call.1} parent=55 // pred_check_branch
        %805 = sbr.rel (%p803) target = $region60
      $region59: #{tpu_custom_call.1} parent=55 // pred_region
        %p806 = scmp.lt.s32.totalorder %s22, 1
        %s807 = scalar_select %p806, %s22, 1
        %s808 = smul.addr %s807, 18
        %s809 = smul.addr %s808, 4
        %s810 = scalar_lea.vmem %s5, %s809
      $region60: #{tpu_custom_call.1} parent=55 // pred_fallthru
        _
    $region56: #{tpu_custom_call.1} parent=5 // pred_fallthru
      _
  $region6: #{tpu_custom_call.1} parent=0 // loop_footer
    %s15 = sadd.s32 1, %s11
  $region7: #{tpu_custom_call.1} parent=0 // loop_footer_branch
    %10 = sbr.rel target = $region3
  $region8: #{tpu_custom_call.1} parent=0 // loop_exit
    _

</llo_original>
